<compile_context>
chip_gen: v7x
topology: tpu7x:2x2x1
jax: 0.10.0
libtpu: 0.0.40
codegen_flags: <defaults>
</compile_context>

<pallas_src>
import math
import functools

import jax
import jax.numpy as jnp
from jax.experimental import pallas as pl
from jax.experimental.pallas import tpu as pltpu


# -----------------------------------------------------------------------------
# Fully fused per-batch kernel:
#   qkv = x @ Wqkv ; RoPE(q,k) ; scaled QK^T ; causal mask ; f32 softmax ;
#   P@V ; out = attn @ Wo ; hh_contrib = P.sum(query axis)
# -----------------------------------------------------------------------------
def _fused_attn_kernel(x_ref, wqkv_ref, wo_ref, cos_ref, sin_ref, rot_ref,
                       o_ref, hh_ref, *, num_heads, num_kv_heads, head_dim):
    H, Hkv, D = num_heads, num_kv_heads, head_dim
    G = H // Hkv
    S = x_ref.shape[1]

    x = x_ref[0]              # (S, hidden)            float32
    wqkv = wqkv_ref[...]      # (hidden, (H+2*Hkv)*D)  float32  (resident across grid)
    wo = wo_ref[...]          # (H*D, hidden)          float32  (resident across grid)
    cos = cos_ref[...]        # (S, D)
    sin = sin_ref[...]        # (S, D)
    rot = rot_ref[...]        # (D, D) +/-1 rotate_half matrix

    # Fused q/k/v projection: one wide MXU matmul, never leaves VMEM.
    qkv = jnp.dot(x, wqkv, preferred_element_type=jnp.float32)   # (S, (H+2Hkv)*D)
    q2 = qkv[:, :H * D]                                          # (S, H*D)
    k2 = qkv[:, H * D:(H + Hkv) * D]                             # (S, Hkv*D)
    v2 = qkv[:, (H + Hkv) * D:]                                  # (S, Hkv*D)

    def rope(xh):
        # apply_rotary_pos_emb_single: x*cos + rotate_half(x)*sin.
        # rotate_half expressed as x @ rot (MXU) to keep the lane shuffle off
        # the VALU slice/concat path (exact: rot entries are +/-1).
        return xh * cos + jnp.dot(xh, rot, preferred_element_type=jnp.float32) * sin

    scale = 1.0 / math.sqrt(D)
    neg_min = jnp.finfo(jnp.float32).min
    row = jax.lax.broadcasted_iota(jnp.int32, (S, S), 0)
    col = jax.lax.broadcasted_iota(jnp.int32, (S, S), 1)
    causal = col <= row                       # _make_causal_mask (prefill path)
    # TODO(synk): decode path with past_key_value (kv_len > q_len mask offset,
    # KV-cache concat) is not implemented here.

    out_cols = []
    hh_rows = []
    for hk in range(Hkv):                     # static unroll over kv heads (GQA)
        k_h = rope(k2[:, hk * D:(hk + 1) * D]).astype(jnp.bfloat16)      # (S, D)
        v_h = v2[:, hk * D:(hk + 1) * D].astype(jnp.bfloat16)            # (S, D)
        for g in range(G):                    # query heads sharing this kv head
            h = hk * G + g
            q_h = rope(q2[:, h * D:(h + 1) * D]).astype(jnp.bfloat16)    # (S, D)
            s = jnp.dot(q_h, k_h.T, preferred_element_type=jnp.float32) * scale
            s = jnp.where(causal, s, neg_min)
            m = jnp.max(s, axis=-1, keepdims=True)
            e = jnp.exp(s - m)                                           # f32 softmax
            p = e * pl.reciprocal(jnp.sum(e, axis=-1, keepdims=True), approx=True)
            hh_rows.append(jnp.sum(p, axis=0, keepdims=True))            # (1, S)
            out_cols.append(
                jnp.dot(p.astype(jnp.bfloat16), v_h,
                        preferred_element_type=jnp.float32))             # (S, D)

    attn = jnp.concatenate(out_cols, axis=-1)                            # (S, H*D)
    # Fused output projection; single lane-dense (S, hidden) store.
    o_ref[0] = jnp.dot(attn, wo, preferred_element_type=jnp.float32).astype(o_ref.dtype)
    hh_ref[0] = jnp.concatenate(hh_rows, axis=0)                         # (H, S)


def pallas_fused_attention(x, w_qkv_t, w_o_t, cos, sin, rot,
                           num_heads, num_kv_heads, head_dim):
    """
    x: (B, S, hidden); w_qkv_t: (hidden, (H+2*Hkv)*D); w_o_t: (H*D, hidden)
    cos/sin: (S, D); rot: (D, D)
    returns attn_output (B, S, hidden), hh_contrib (B, H, S) [= p.sum over queries]
    """
    B, S, hidden = x.shape
    H, Hkv, D = num_heads, num_kv_heads, head_dim
    kernel = functools.partial(
        _fused_attn_kernel, num_heads=H, num_kv_heads=Hkv, head_dim=D)

    # TODO(synk): for long S, flash-tile the KV axis (grid (B, S//tq, S//tk),
    # online-softmax scratch) and hoist the projections into separate tiled
    # matmul kernels; full-S scores are fine at these sizes and keep the exact
    # hh_score semantics simple.
    return pl.pallas_call(
        kernel,
        out_shape=(
            jax.ShapeDtypeStruct((B, S, hidden), x.dtype),
            jax.ShapeDtypeStruct((B, H, S), jnp.float32),
        ),
        grid=(B,),
        in_specs=[
            pl.BlockSpec((1, S, hidden), lambda b: (b, 0, 0)),
            pl.BlockSpec(w_qkv_t.shape, lambda b: (0, 0)),   # resident weights
            pl.BlockSpec(w_o_t.shape, lambda b: (0, 0)),     # resident weights
            pl.BlockSpec((S, D), lambda b: (0, 0)),
            pl.BlockSpec((S, D), lambda b: (0, 0)),
            pl.BlockSpec((D, D), lambda b: (0, 0)),
        ],
        out_specs=(
            pl.BlockSpec((1, S, hidden), lambda b: (b, 0, 0)),
            pl.BlockSpec((1, H, S), lambda b: (b, 0, 0)),
        ),
        compiler_params=pltpu.CompilerParams(dimension_semantics=("parallel",)),
    )(x, w_qkv_t, w_o_t, cos, sin, rot)


# -----------------------------------------------------------------------------
# Module wrapper (glue in plain JAX)
# -----------------------------------------------------------------------------
class Config:
    hidden_size = 128
    num_attention_heads = 4
    num_key_value_heads = 2
    max_position_embeddings = 64
    rope_theta = 10000.0
    pretraining_tp = 1
    rope_scaling = None
    # QH2OKVCache hyperparams (eviction not executed on TPU; see TODO)
    hh_size = 0.2
    recent_size = 0.0
    kbits = 4
    vbits = 4
    alpha = 1.0


def init_params(key, cfg):
    h = cfg.hidden_size
    nh = cfg.num_attention_heads
    nkv = cfg.num_key_value_heads
    d = h // nh
    k1, k2, k3, k4 = jax.random.split(key, 4)
    scale = 0.02
    # nn.Linear weight layout: (out_features, in_features)
    return {
        "q_proj": scale * jax.random.normal(k1, (nh * d, h), jnp.float32),
        "k_proj": scale * jax.random.normal(k2, (nkv * d, h), jnp.float32),
        "v_proj": scale * jax.random.normal(k3, (nkv * d, h), jnp.float32),
        "o_proj": scale * jax.random.normal(k4, (h, nh * d), jnp.float32),
    }


def rotary_cos_sin(position_ids, head_dim, base):
    # LlamaRotaryEmbedding, gathered at position_ids -> (S, D)
    inv_freq = 1.0 / (base ** (jnp.arange(0, head_dim, 2, dtype=jnp.float32) / head_dim))
    freqs = position_ids.astype(jnp.float32)[:, None] * inv_freq[None, :]
    emb = jnp.concatenate([freqs, freqs], axis=-1)
    return jnp.cos(emb), jnp.sin(emb)


def rotate_half_matrix(head_dim):
    # R such that x @ R == rotate_half(x) == concat([-x2, x1]); entries are +/-1.
    half = head_dim // 2
    i = jnp.arange(head_dim)[:, None]
    j = jnp.arange(head_dim)[None, :]
    neg = jnp.where((j < half) & (i == j + half), -1.0, 0.0)
    pos = jnp.where((j >= half) & (i == j - half), 1.0, 0.0)
    return (neg + pos).astype(jnp.float32)


@functools.partial(jax.jit, static_argnames=("cfg",))
def qh2o_attention_forward(params, hidden_states, position_ids, cfg: Config):
    bsz, q_len, hidden = hidden_states.shape
    nh = cfg.num_attention_heads
    nkv = cfg.num_key_value_heads
    d = hidden // nh

    # Pre-transposed, pre-concatenated weights (constant-folded under jit).
    w_qkv_t = jnp.concatenate(
        [params["q_proj"].T, params["k_proj"].T, params["v_proj"].T], axis=1)
    w_o_t = params["o_proj"].T

    cos, sin = rotary_cos_sin(position_ids, d, cfg.rope_theta)
    rot = rotate_half_matrix(d)

    # Single fused kernel: qkv proj + RoPE + causal attention + o_proj + hh contrib.
    out, hh_bhs = pallas_fused_attention(
        hidden_states, w_qkv_t, w_o_t, cos, sin, rot, nh, nkv, d)

    # hh_score update of QH2OKVCache: attn_weights.sum(0).sum(1) -> (num_heads, kv_len)
    # (per-batch p.sum(q) computed in-kernel; only the tiny batch sum is left to XLA)
    hh_score = hh_bhs.sum(axis=0)
    # TODO(synk): QH2OKVCache eviction (Qerror quantization scoring, topk/sort,
    # boolean-mask gather with data-dependent cache_size) has no static-shape
    # Pallas equivalent and is not implemented.

    # output_attentions=False default: attn_weights are never materialized.
    return out, None, hh_score


# -----------------------------------------------------------------------------
# Pure-JAX reference (mirrors the PyTorch module) for correctness checking
# -----------------------------------------------------------------------------
def reference_forward(params, hidden_states, position_ids, cfg):
    bsz, q_len, hidden = hidden_states.shape
    nh, nkv = cfg.num_attention_heads, cfg.num_key_value_heads
    d = hidden // nh
    g = nh // nkv
    q = (hidden_states @ params["q_proj"].T).reshape(bsz, q_len, nh, d).transpose(0, 2, 1, 3)
    k = (hidden_states @ params["k_proj"].T).reshape(bsz, q_len, nkv, d).transpose(0, 2, 1, 3)
    v = (hidden_states @ params["v_proj"].T).reshape(bsz, q_len, nkv, d).transpose(0, 2, 1, 3)
    cos, sin = rotary_cos_sin(position_ids, d, cfg.rope_theta)

    def rope(x):
        x1, x2 = x[..., :d // 2], x[..., d // 2:]
        return x * cos + jnp.concatenate([-x2, x1], axis=-1) * sin

    q, k = rope(q), rope(k)
    k = jnp.repeat(k, g, axis=1)
    v = jnp.repeat(v, g, axis=1)
    s = jnp.einsum("bhqd,bhkd->bhqk", q, k) / math.sqrt(d)
    mask = jnp.triu(jnp.full((q_len, q_len), jnp.finfo(jnp.float32).min), k=1)
    p = jax.nn.softmax(s + mask, axis=-1)
    hh = p.sum(axis=0).sum(axis=1)
    o = jnp.einsum("bhqk,bhkd->bhqd", p, v).transpose(0, 2, 1, 3).reshape(bsz, q_len, hidden)
    return o @ params["o_proj"].T, hh


# -----------------------------------------------------------------------------
# main
# -----------------------------------------------------------------------------
if __name__ == "__main__":
    cfg = Config()
    bsz, q_len = 2, 8

    key = jax.random.PRNGKey(0)
    kp, kx = jax.random.split(key)
    params = init_params(kp, cfg)
    hidden_states = jax.random.normal(kx, (bsz, q_len, cfg.hidden_size), jnp.float32)
    position_ids = jnp.arange(q_len, dtype=jnp.int32)

    out, attn_w, hh = qh2o_attention_forward(params, hidden_states, position_ids, cfg)
    jax.block_until_ready((out, hh))

    ref_out, ref_hh = reference_forward(params, hidden_states, position_ids, cfg)

    assert out.shape == (bsz, q_len, cfg.hidden_size)
    assert hh.shape == (cfg.num_attention_heads, q_len)
    assert attn_w is None                       # output_attentions=False default
    assert bool(jnp.all(jnp.isfinite(out)))
    # each causal softmax row sums to 1 -> per-head hh_score totals bsz*q_len
    assert bool(jnp.allclose(hh.sum(-1), float(bsz * q_len), rtol=1e-2))
    # numerics vs. pure-JAX reference (bf16 MXU operands + approx reciprocal)
    assert bool(jnp.allclose(out, ref_out, atol=2e-2, rtol=2e-2))
    assert bool(jnp.allclose(hh, ref_hh, atol=2e-2, rtol=2e-2))

    print("KERNEL_OK")
</pallas_src>

<mosaic_0001>
module attributes {stable_mosaic.version = 11 : i64} {
  func.func @_fused_attn_kernel(%arg0: i32, %arg1: memref<1x8x128xf32, #tpu.memory_space<vmem>>, %arg2: memref<128x256xf32, #tpu.memory_space<vmem>>, %arg3: memref<128x128xf32, #tpu.memory_space<vmem>>, %arg4: memref<8x32xf32, #tpu.memory_space<vmem>>, %arg5: memref<8x32xf32, #tpu.memory_space<vmem>>, %arg6: memref<32x32xf32, #tpu.memory_space<vmem>>, %arg7: memref<1x8x128xf32, #tpu.memory_space<vmem>>, %arg8: memref<1x4x8xf32, #tpu.memory_space<vmem>>) attributes {dimension_semantics = [#tpu.dimension_semantics<parallel>], iteration_bounds = array<i64: 2>, scalar_prefetch = 0 : i64, scratch_operands = 0 : i64, tpu.core_type = #tpu.core_type<tc>, window_params = [{transform_indices = @transform_0, window_bounds = array<i64: 1, 8, 128>}, {pipeline_mode = #tpu.pipeline_mode<synchronous>, transform_indices = @transform_1, window_bounds = array<i64: 128, 256>}, {pipeline_mode = #tpu.pipeline_mode<synchronous>, transform_indices = @transform_2, window_bounds = array<i64: 128, 128>}, {pipeline_mode = #tpu.pipeline_mode<synchronous>, transform_indices = @transform_3, window_bounds = array<i64: 8, 32>}, {pipeline_mode = #tpu.pipeline_mode<synchronous>, transform_indices = @transform_4, window_bounds = array<i64: 8, 32>}, {pipeline_mode = #tpu.pipeline_mode<synchronous>, transform_indices = @transform_5, window_bounds = array<i64: 32, 32>}, {transform_indices = @transform_6, window_bounds = array<i64: 1, 8, 128>}, {transform_indices = @transform_7, window_bounds = array<i64: 1, 4, 8>}]} {
    %c0 = arith.constant 0 : index
    %c0_0 = arith.constant 0 : index
    %c0_1 = arith.constant 0 : index
    %0 = vector.load %arg1[%c0, %c0_0, %c0_1] : memref<1x8x128xf32, #tpu.memory_space<vmem>>, vector<1x8x128xf32>
    %1 = vector.shape_cast %0 : vector<1x8x128xf32> to vector<8x128xf32>
    %c0_2 = arith.constant 0 : index
    %c0_3 = arith.constant 0 : index
    %2 = vector.load %arg2[%c0_2, %c0_3] : memref<128x256xf32, #tpu.memory_space<vmem>>, vector<128x256xf32>
    %c0_4 = arith.constant 0 : index
    %c0_5 = arith.constant 0 : index
    %3 = vector.load %arg3[%c0_4, %c0_5] : memref<128x128xf32, #tpu.memory_space<vmem>>, vector<128x128xf32>
    %c0_6 = arith.constant 0 : index
    %c0_7 = arith.constant 0 : index
    %4 = vector.load %arg4[%c0_6, %c0_7] : memref<8x32xf32, #tpu.memory_space<vmem>>, vector<8x32xf32>
    %c0_8 = arith.constant 0 : index
    %c0_9 = arith.constant 0 : index
    %5 = vector.load %arg5[%c0_8, %c0_9] : memref<8x32xf32, #tpu.memory_space<vmem>>, vector<8x32xf32>
    %c0_10 = arith.constant 0 : index
    %c0_11 = arith.constant 0 : index
    %6 = vector.load %arg6[%c0_10, %c0_11] : memref<32x32xf32, #tpu.memory_space<vmem>>, vector<32x32xf32>
    %cst = arith.constant dense<0.000000e+00> : vector<8x256xf32>
    %7 = tpu.matmul %1, %2, %cst {dimension_numbers = #tpu.dot_dimension_numbers<[1], [0], [0], [1], [0, 0, 1, 1], [], []>} : vector<8x128xf32>, vector<128x256xf32>, vector<8x256xf32> -> vector<8x256xf32>
    %8 = vector.extract_strided_slice %7 {offsets = [0, 0], sizes = [8, 128], strides = [1, 1]} : vector<8x256xf32> to vector<8x128xf32>
    %9 = vector.extract_strided_slice %7 {offsets = [0, 128], sizes = [8, 64], strides = [1, 1]} : vector<8x256xf32> to vector<8x64xf32>
    %10 = vector.extract_strided_slice %7 {offsets = [0, 192], sizes = [8, 64], strides = [1, 1]} : vector<8x256xf32> to vector<8x64xf32>
    %11 = tpu.iota {dimensions = array<i32: 0>} : vector<8x8xi32>
    %12 = tpu.iota {dimensions = array<i32: 1>} : vector<8x8xi32>
    %13 = arith.cmpi sle, %12, %11 : vector<8x8xi32>
    %14 = vector.extract_strided_slice %9 {offsets = [0, 0], sizes = [8, 32], strides = [1, 1]} : vector<8x64xf32> to vector<8x32xf32>
    %15 = arith.mulf %14, %4 : vector<8x32xf32>
    %cst_12 = arith.constant dense<0.000000e+00> : vector<8x32xf32>
    %16 = tpu.matmul %14, %6, %cst_12 {dimension_numbers = #tpu.dot_dimension_numbers<[1], [0], [0], [1], [0, 0, 1, 1], [], []>} : vector<8x32xf32>, vector<32x32xf32>, vector<8x32xf32> -> vector<8x32xf32>
    %17 = arith.mulf %16, %5 : vector<8x32xf32>
    %18 = arith.addf %15, %17 : vector<8x32xf32>
    %19 = arith.truncf %18 : vector<8x32xf32> to vector<8x32xbf16>
    %20 = vector.extract_strided_slice %10 {offsets = [0, 0], sizes = [8, 32], strides = [1, 1]} : vector<8x64xf32> to vector<8x32xf32>
    %21 = arith.truncf %20 : vector<8x32xf32> to vector<8x32xbf16>
    %22 = vector.extract_strided_slice %8 {offsets = [0, 0], sizes = [8, 32], strides = [1, 1]} : vector<8x128xf32> to vector<8x32xf32>
    %23 = arith.mulf %22, %4 : vector<8x32xf32>
    %cst_13 = arith.constant dense<0.000000e+00> : vector<8x32xf32>
    %24 = tpu.matmul %22, %6, %cst_13 {dimension_numbers = #tpu.dot_dimension_numbers<[1], [0], [0], [1], [0, 0, 1, 1], [], []>} : vector<8x32xf32>, vector<32x32xf32>, vector<8x32xf32> -> vector<8x32xf32>
    %25 = arith.mulf %24, %5 : vector<8x32xf32>
    %26 = arith.addf %23, %25 : vector<8x32xf32>
    %27 = arith.truncf %26 : vector<8x32xf32> to vector<8x32xbf16>
    %28 = tpu.transpose %19, [1, 0] : vector<8x32xbf16> -> vector<32x8xbf16>
    %cst_14 = arith.constant dense<0.000000e+00> : vector<8x8xf32>
    %29 = tpu.matmul %27, %28, %cst_14 {dimension_numbers = #tpu.dot_dimension_numbers<[1], [0], [0], [1], [0, 0, 1, 1], [], []>} : vector<8x32xbf16>, vector<32x8xbf16>, vector<8x8xf32> -> vector<8x8xf32>
    %cst_15 = arith.constant 0.176776692 : f32
    %30 = vector.broadcast %cst_15 : f32 to vector<8x8xf32>
    %31 = arith.mulf %29, %30 : vector<8x8xf32>
    %cst_16 = arith.constant -3.40282347E+38 : f32
    %32 = vector.broadcast %cst_16 : f32 to vector<8x8xf32>
    %33 = arith.select %13, %31, %32 : vector<8x8xi1>, vector<8x8xf32>
    %cst_17 = arith.constant dense<0xFF800000> : vector<8xf32>
    %34 = vector.multi_reduction <maximumf>, %33, %cst_17 [1] : vector<8x8xf32> to vector<8xf32>
    %35 = vector.shape_cast %34 : vector<8xf32> to vector<8x1xf32>
    %36 = vector.broadcast %35 : vector<8x1xf32> to vector<8x8xf32>
    %37 = arith.subf %33, %36 : vector<8x8xf32>
    %38 = math.exp %37 : vector<8x8xf32>
    %cst_18 = arith.constant dense<0.000000e+00> : vector<8xf32>
    %39 = vector.multi_reduction <add>, %38, %cst_18 [1] : vector<8x8xf32> to vector<8xf32>
    %40 = vector.shape_cast %39 : vector<8xf32> to vector<8x1xf32>
    %41 = tpu.reciprocal %40 {approx = true} : vector<8x1xf32> -> vector<8x1xf32>
    %42 = vector.broadcast %41 : vector<8x1xf32> to vector<8x8xf32>
    %43 = arith.mulf %38, %42 : vector<8x8xf32>
    %cst_19 = arith.constant dense<0.000000e+00> : vector<8xf32>
    %44 = vector.multi_reduction <add>, %43, %cst_19 [0] : vector<8x8xf32> to vector<8xf32>
    %45 = vector.shape_cast %44 : vector<8xf32> to vector<1x8xf32>
    %46 = arith.truncf %43 : vector<8x8xf32> to vector<8x8xbf16>
    %cst_20 = arith.constant dense<0.000000e+00> : vector<8x32xf32>
    %47 = tpu.matmul %46, %21, %cst_20 {dimension_numbers = #tpu.dot_dimension_numbers<[1], [0], [0], [1], [0, 0, 1, 1], [], []>} : vector<8x8xbf16>, vector<8x32xbf16>, vector<8x32xf32> -> vector<8x32xf32>
    %48 = vector.extract_strided_slice %8 {offsets = [0, 32], sizes = [8, 32], strides = [1, 1]} : vector<8x128xf32> to vector<8x32xf32>
    %49 = arith.mulf %48, %4 : vector<8x32xf32>
    %cst_21 = arith.constant dense<0.000000e+00> : vector<8x32xf32>
    %50 = tpu.matmul %48, %6, %cst_21 {dimension_numbers = #tpu.dot_dimension_numbers<[1], [0], [0], [1], [0, 0, 1, 1], [], []>} : vector<8x32xf32>, vector<32x32xf32>, vector<8x32xf32> -> vector<8x32xf32>
    %51 = arith.mulf %50, %5 : vector<8x32xf32>
    %52 = arith.addf %49, %51 : vector<8x32xf32>
    %53 = arith.truncf %52 : vector<8x32xf32> to vector<8x32xbf16>
    %54 = tpu.transpose %19, [1, 0] : vector<8x32xbf16> -> vector<32x8xbf16>
    %cst_22 = arith.constant dense<0.000000e+00> : vector<8x8xf32>
    %55 = tpu.matmul %53, %54, %cst_22 {dimension_numbers = #tpu.dot_dimension_numbers<[1], [0], [0], [1], [0, 0, 1, 1], [], []>} : vector<8x32xbf16>, vector<32x8xbf16>, vector<8x8xf32> -> vector<8x8xf32>
    %cst_23 = arith.constant 0.176776692 : f32
    %56 = vector.broadcast %cst_23 : f32 to vector<8x8xf32>
    %57 = arith.mulf %55, %56 : vector<8x8xf32>
    %cst_24 = arith.constant -3.40282347E+38 : f32
    %58 = vector.broadcast %cst_24 : f32 to vector<8x8xf32>
    %59 = arith.select %13, %57, %58 : vector<8x8xi1>, vector<8x8xf32>
    %cst_25 = arith.constant dense<0xFF800000> : vector<8xf32>
    %60 = vector.multi_reduction <maximumf>, %59, %cst_25 [1] : vector<8x8xf32> to vector<8xf32>
    %61 = vector.shape_cast %60 : vector<8xf32> to vector<8x1xf32>
    %62 = vector.broadcast %61 : vector<8x1xf32> to vector<8x8xf32>
    %63 = arith.subf %59, %62 : vector<8x8xf32>
    %64 = math.exp %63 : vector<8x8xf32>
    %cst_26 = arith.constant dense<0.000000e+00> : vector<8xf32>
    %65 = vector.multi_reduction <add>, %64, %cst_26 [1] : vector<8x8xf32> to vector<8xf32>
    %66 = vector.shape_cast %65 : vector<8xf32> to vector<8x1xf32>
    %67 = tpu.reciprocal %66 {approx = true} : vector<8x1xf32> -> vector<8x1xf32>
    %68 = vector.broadcast %67 : vector<8x1xf32> to vector<8x8xf32>
    %69 = arith.mulf %64, %68 : vector<8x8xf32>
    %cst_27 = arith.constant dense<0.000000e+00> : vector<8xf32>
    %70 = vector.multi_reduction <add>, %69, %cst_27 [0] : vector<8x8xf32> to vector<8xf32>
    %71 = vector.shape_cast %70 : vector<8xf32> to vector<1x8xf32>
    %72 = arith.truncf %69 : vector<8x8xf32> to vector<8x8xbf16>
    %cst_28 = arith.constant dense<0.000000e+00> : vector<8x32xf32>
    %73 = tpu.matmul %72, %21, %cst_28 {dimension_numbers = #tpu.dot_dimension_numbers<[1], [0], [0], [1], [0, 0, 1, 1], [], []>} : vector<8x8xbf16>, vector<8x32xbf16>, vector<8x32xf32> -> vector<8x32xf32>
    %74 = vector.extract_strided_slice %9 {offsets = [0, 32], sizes = [8, 32], strides = [1, 1]} : vector<8x64xf32> to vector<8x32xf32>
    %75 = arith.mulf %74, %4 : vector<8x32xf32>
    %cst_29 = arith.constant dense<0.000000e+00> : vector<8x32xf32>
    %76 = tpu.matmul %74, %6, %cst_29 {dimension_numbers = #tpu.dot_dimension_numbers<[1], [0], [0], [1], [0, 0, 1, 1], [], []>} : vector<8x32xf32>, vector<32x32xf32>, vector<8x32xf32> -> vector<8x32xf32>
    %77 = arith.mulf %76, %5 : vector<8x32xf32>
    %78 = arith.addf %75, %77 : vector<8x32xf32>
    %79 = arith.truncf %78 : vector<8x32xf32> to vector<8x32xbf16>
    %80 = vector.extract_strided_slice %10 {offsets = [0, 32], sizes = [8, 32], strides = [1, 1]} : vector<8x64xf32> to vector<8x32xf32>
    %81 = arith.truncf %80 : vector<8x32xf32> to vector<8x32xbf16>
    %82 = vector.extract_strided_slice %8 {offsets = [0, 64], sizes = [8, 32], strides = [1, 1]} : vector<8x128xf32> to vector<8x32xf32>
    %83 = arith.mulf %82, %4 : vector<8x32xf32>
    %cst_30 = arith.constant dense<0.000000e+00> : vector<8x32xf32>
    %84 = tpu.matmul %82, %6, %cst_30 {dimension_numbers = #tpu.dot_dimension_numbers<[1], [0], [0], [1], [0, 0, 1, 1], [], []>} : vector<8x32xf32>, vector<32x32xf32>, vector<8x32xf32> -> vector<8x32xf32>
    %85 = arith.mulf %84, %5 : vector<8x32xf32>
    %86 = arith.addf %83, %85 : vector<8x32xf32>
    %87 = arith.truncf %86 : vector<8x32xf32> to vector<8x32xbf16>
    %88 = tpu.transpose %79, [1, 0] : vector<8x32xbf16> -> vector<32x8xbf16>
    %cst_31 = arith.constant dense<0.000000e+00> : vector<8x8xf32>
    %89 = tpu.matmul %87, %88, %cst_31 {dimension_numbers = #tpu.dot_dimension_numbers<[1], [0], [0], [1], [0, 0, 1, 1], [], []>} : vector<8x32xbf16>, vector<32x8xbf16>, vector<8x8xf32> -> vector<8x8xf32>
    %cst_32 = arith.constant 0.176776692 : f32
    %90 = vector.broadcast %cst_32 : f32 to vector<8x8xf32>
    %91 = arith.mulf %89, %90 : vector<8x8xf32>
    %cst_33 = arith.constant -3.40282347E+38 : f32
    %92 = vector.broadcast %cst_33 : f32 to vector<8x8xf32>
    %93 = arith.select %13, %91, %92 : vector<8x8xi1>, vector<8x8xf32>
    %cst_34 = arith.constant dense<0xFF800000> : vector<8xf32>
    %94 = vector.multi_reduction <maximumf>, %93, %cst_34 [1] : vector<8x8xf32> to vector<8xf32>
    %95 = vector.shape_cast %94 : vector<8xf32> to vector<8x1xf32>
    %96 = vector.broadcast %95 : vector<8x1xf32> to vector<8x8xf32>
    %97 = arith.subf %93, %96 : vector<8x8xf32>
    %98 = math.exp %97 : vector<8x8xf32>
    %cst_35 = arith.constant dense<0.000000e+00> : vector<8xf32>
    %99 = vector.multi_reduction <add>, %98, %cst_35 [1] : vector<8x8xf32> to vector<8xf32>
    %100 = vector.shape_cast %99 : vector<8xf32> to vector<8x1xf32>
    %101 = tpu.reciprocal %100 {approx = true} : vector<8x1xf32> -> vector<8x1xf32>
    %102 = vector.broadcast %101 : vector<8x1xf32> to vector<8x8xf32>
    %103 = arith.mulf %98, %102 : vector<8x8xf32>
    %cst_36 = arith.constant dense<0.000000e+00> : vector<8xf32>
    %104 = vector.multi_reduction <add>, %103, %cst_36 [0] : vector<8x8xf32> to vector<8xf32>
    %105 = vector.shape_cast %104 : vector<8xf32> to vector<1x8xf32>
    %106 = arith.truncf %103 : vector<8x8xf32> to vector<8x8xbf16>
    %cst_37 = arith.constant dense<0.000000e+00> : vector<8x32xf32>
    %107 = tpu.matmul %106, %81, %cst_37 {dimension_numbers = #tpu.dot_dimension_numbers<[1], [0], [0], [1], [0, 0, 1, 1], [], []>} : vector<8x8xbf16>, vector<8x32xbf16>, vector<8x32xf32> -> vector<8x32xf32>
    %108 = vector.extract_strided_slice %8 {offsets = [0, 96], sizes = [8, 32], strides = [1, 1]} : vector<8x128xf32> to vector<8x32xf32>
    %109 = arith.mulf %108, %4 : vector<8x32xf32>
    %cst_38 = arith.constant dense<0.000000e+00> : vector<8x32xf32>
    %110 = tpu.matmul %108, %6, %cst_38 {dimension_numbers = #tpu.dot_dimension_numbers<[1], [0], [0], [1], [0, 0, 1, 1], [], []>} : vector<8x32xf32>, vector<32x32xf32>, vector<8x32xf32> -> vector<8x32xf32>
    %111 = arith.mulf %110, %5 : vector<8x32xf32>
    %112 = arith.addf %109, %111 : vector<8x32xf32>
    %113 = arith.truncf %112 : vector<8x32xf32> to vector<8x32xbf16>
    %114 = tpu.transpose %79, [1, 0] : vector<8x32xbf16> -> vector<32x8xbf16>
    %cst_39 = arith.constant dense<0.000000e+00> : vector<8x8xf32>
    %115 = tpu.matmul %113, %114, %cst_39 {dimension_numbers = #tpu.dot_dimension_numbers<[1], [0], [0], [1], [0, 0, 1, 1], [], []>} : vector<8x32xbf16>, vector<32x8xbf16>, vector<8x8xf32> -> vector<8x8xf32>
    %cst_40 = arith.constant 0.176776692 : f32
    %116 = vector.broadcast %cst_40 : f32 to vector<8x8xf32>
    %117 = arith.mulf %115, %116 : vector<8x8xf32>
    %cst_41 = arith.constant -3.40282347E+38 : f32
    %118 = vector.broadcast %cst_41 : f32 to vector<8x8xf32>
    %119 = arith.select %13, %117, %118 : vector<8x8xi1>, vector<8x8xf32>
    %cst_42 = arith.constant dense<0xFF800000> : vector<8xf32>
    %120 = vector.multi_reduction <maximumf>, %119, %cst_42 [1] : vector<8x8xf32> to vector<8xf32>
    %121 = vector.shape_cast %120 : vector<8xf32> to vector<8x1xf32>
    %122 = vector.broadcast %121 : vector<8x1xf32> to vector<8x8xf32>
    %123 = arith.subf %119, %122 : vector<8x8xf32>
    %124 = math.exp %123 : vector<8x8xf32>
    %cst_43 = arith.constant dense<0.000000e+00> : vector<8xf32>
    %125 = vector.multi_reduction <add>, %124, %cst_43 [1] : vector<8x8xf32> to vector<8xf32>
    %126 = vector.shape_cast %125 : vector<8xf32> to vector<8x1xf32>
    %127 = tpu.reciprocal %126 {approx = true} : vector<8x1xf32> -> vector<8x1xf32>
    %128 = vector.broadcast %127 : vector<8x1xf32> to vector<8x8xf32>
    %129 = arith.mulf %124, %128 : vector<8x8xf32>
    %cst_44 = arith.constant dense<0.000000e+00> : vector<8xf32>
    %130 = vector.multi_reduction <add>, %129, %cst_44 [0] : vector<8x8xf32> to vector<8xf32>
    %131 = vector.shape_cast %130 : vector<8xf32> to vector<1x8xf32>
    %132 = arith.truncf %129 : vector<8x8xf32> to vector<8x8xbf16>
    %cst_45 = arith.constant dense<0.000000e+00> : vector<8x32xf32>
    %133 = tpu.matmul %132, %81, %cst_45 {dimension_numbers = #tpu.dot_dimension_numbers<[1], [0], [0], [1], [0, 0, 1, 1], [], []>} : vector<8x8xbf16>, vector<8x32xbf16>, vector<8x32xf32> -> vector<8x32xf32>
    %134 = tpu.concatenate %47, %73, %107, %133 in 1 : vector<8x32xf32>, vector<8x32xf32>, vector<8x32xf32>, vector<8x32xf32> -> vector<8x128xf32>
    %cst_46 = arith.constant dense<0.000000e+00> : vector<8x128xf32>
    %135 = tpu.matmul %134, %3, %cst_46 {dimension_numbers = #tpu.dot_dimension_numbers<[1], [0], [0], [1], [0, 0, 1, 1], [], []>} : vector<8x128xf32>, vector<128x128xf32>, vector<8x128xf32> -> vector<8x128xf32>
    %c0_47 = arith.constant 0 : index
    %c0_48 = arith.constant 0 : index
    %c0_49 = arith.constant 0 : index
    %136 = vector.load %arg7[%c0_47, %c0_48, %c0_49] : memref<1x8x128xf32, #tpu.memory_space<vmem>>, vector<1x8x128xf32>
    %137 = vector.shape_cast %136 : vector<1x8x128xf32> to vector<8x128xf32>
    %138 = vector.shape_cast %135 : vector<8x128xf32> to vector<1x8x128xf32>
    tpu.vector_store %arg7[%c0_47, %c0_48, %c0_49], %138 {strides = array<i32>} : memref<1x8x128xf32, #tpu.memory_space<vmem>>, vector<1x8x128xf32>,
    %139 = tpu.concatenate %45, %71, %105, %131 in 0 : vector<1x8xf32>, vector<1x8xf32>, vector<1x8xf32>, vector<1x8xf32> -> vector<4x8xf32>
    %c0_50 = arith.constant 0 : index
    %c0_51 = arith.constant 0 : index
    %c0_52 = arith.constant 0 : index
    %140 = vector.load %arg8[%c0_50, %c0_51, %c0_52] : memref<1x4x8xf32, #tpu.memory_space<vmem>>, vector<1x4x8xf32>
    %141 = vector.shape_cast %140 : vector<1x4x8xf32> to vector<4x8xf32>
    %142 = vector.shape_cast %139 : vector<4x8xf32> to vector<1x4x8xf32>
    tpu.vector_store %arg8[%c0_50, %c0_51, %c0_52], %142 {strides = array<i32>} : memref<1x4x8xf32, #tpu.memory_space<vmem>>, vector<1x4x8xf32>,
    return
  }
  func.func @transform_0(%arg0: i32) -> (i32, i32, i32) {
    %c0_i32 = arith.constant 0 : i32
    %c0_i32_0 = arith.constant 0 : i32
    %c0_i32_1 = arith.constant 0 : i32
    return %arg0, %c0_i32, %c0_i32_0 : i32, i32, i32
  }
  func.func @transform_1(%arg0: i32) -> (i32, i32) {
    %c0_i32 = arith.constant 0 : i32
    %c0_i32_0 = arith.constant 0 : i32
    %c0_i32_1 = arith.constant 0 : i32
    return %c0_i32, %c0_i32_0 : i32, i32
  }
  func.func @transform_2(%arg0: i32) -> (i32, i32) {
    %c0_i32 = arith.constant 0 : i32
    %c0_i32_0 = arith.constant 0 : i32
    %c0_i32_1 = arith.constant 0 : i32
    return %c0_i32, %c0_i32_0 : i32, i32
  }
  func.func @transform_3(%arg0: i32) -> (i32, i32) {
    %c0_i32 = arith.constant 0 : i32
    %c0_i32_0 = arith.constant 0 : i32
    %c0_i32_1 = arith.constant 0 : i32
    return %c0_i32, %c0_i32_0 : i32, i32
  }
  func.func @transform_4(%arg0: i32) -> (i32, i32) {
    %c0_i32 = arith.constant 0 : i32
    %c0_i32_0 = arith.constant 0 : i32
    %c0_i32_1 = arith.constant 0 : i32
    return %c0_i32, %c0_i32_0 : i32, i32
  }
  func.func @transform_5(%arg0: i32) -> (i32, i32) {
    %c0_i32 = arith.constant 0 : i32
    %c0_i32_0 = arith.constant 0 : i32
    %c0_i32_1 = arith.constant 0 : i32
    return %c0_i32, %c0_i32_0 : i32, i32
  }
  func.func @transform_6(%arg0: i32) -> (i32, i32, i32) {
    %c0_i32 = arith.constant 0 : i32
    %c0_i32_0 = arith.constant 0 : i32
    %c0_i32_1 = arith.constant 0 : i32
    return %arg0, %c0_i32, %c0_i32_0 : i32, i32, i32
  }
  func.func @transform_7(%arg0: i32) -> (i32, i32, i32) {
    %c0_i32 = arith.constant 0 : i32
    %c0_i32_0 = arith.constant 0 : i32
    %c0_i32_1 = arith.constant 0 : i32
    return %arg0, %c0_i32, %c0_i32_0 : i32, i32, i32
  }
}

</mosaic_0001>

<llo_original>
// kernel: qh2o_attention_forward.1
$region0: #{qh2o_attention_forward.1}
  #allocation0 [shape = 'u32[]', space=smem, size = 0x4, offset = 0x4, fixed_abs, tag = 'smem constant byte address 0x4 - core index']
  #allocation1 [shape = 'u32[144,128]{1,0:T(1,128)}', space=vmem, size = 0x12000, scoped, tag = 'internal scratch']
  %s0 = inlined_call_operand.vmem [shape: f32[2,8,128], index: 0, kind: input, shape index: {}]
  %s1 = inlined_call_operand.vmem [shape: f32[128,256], index: 1, kind: input, shape index: {}]
  %s2 = inlined_call_operand.vmem [shape: f32[128,128], index: 2, kind: input, shape index: {}]
  %s3 = inlined_call_operand.vmem [shape: f32[8,32], index: 3, kind: input, shape index: {}]
  %s4 = inlined_call_operand.vmem [shape: f32[8,32], index: 4, kind: input, shape index: {}]
  %s5 = inlined_call_operand.vmem [shape: f32[32,32], index: 5, kind: input, shape index: {}]
  %s6 = inlined_call_operand.hbm [shape: f32[2,8,128], index: 6, kind: output, shape index: {0}]
  %s7 = inlined_call_operand.vmem [shape: f32[2,4,8], index: 7, kind: output, shape index: {1}]
  %8 = xla_tuple %s6, %s7
  %s9 = sld [smem:[#allocation0]]
  $region65: #{qh2o_attention_forward.1} parent=0
    _
  %s11 = ssub.s32 1, %s9
  %s12 = scalar_select 0, %s11, %s9
  $region1: #{qh2o_attention_forward.1} parent=0
    #allocation2 [shape = 'u8[8192]{0}', space=vmem, size = 0x2000, scoped, tag = 'output window, operand 0']
    #allocation3 [shape = 's32[2]{0}', space=sflag, size = 0x8, scoped, tag = 'scoped memory for qh2o_attention_forward.1']
    %13 = vsyncpa [#allocation3], 0
    %s14 = scalar_lea.sflag [#allocation3], 1
    %15 = vsyncpa %s14, 0
    loop: start=0, step=1, limit=4
    $region2: #{qh2o_attention_forward.1} parent=1 // loop_pre_header
      _
    $region3: #{qh2o_attention_forward.1} parent=1 // loop_header
      %s17 = sphi 0, %s21
      %p18 = scmp.ge.s32.totalorder %s17, 4
      %s27 = sphi 0, %s29
      %s30 = sphi 0, %s27
      %s31 = sphi 0, %s30
      %s47 = sphi 0, %s31
      %s51 = sphi 0, %s51
      %s53 = sphi 0, %s51
      %s54 = sphi 0, %s53
      %s68 = sphi 0, %s54
      %s72 = sphi 0, %s72
      %s74 = sphi 0, %s72
      %s75 = sphi 0, %s74
      %s89 = sphi 0, %s75
      %s93 = sphi 0, %s93
      %s95 = sphi 0, %s93
      %s96 = sphi 0, %s95
      %s110 = sphi 0, %s96
      %s114 = sphi 0, %s114
      %s116 = sphi 0, %s114
      %s117 = sphi 0, %s116
      %s131 = sphi 0, %s117
      %s135 = sphi 0, %s135
      %s137 = sphi 0, %s135
      %s138 = sphi 0, %s137
      %s152 = sphi 0, %s138
      %s158 = sphi 0, %s160
      %s161 = sphi 0, %s158
      %s162 = sphi 0, %s161
      %s178 = sphi 0, %s162
      %s184 = sphi 0, %s186
      %s187 = sphi 0, %s184
      %s188 = sphi 0, %s187
      %s204 = sphi 0, %s188
    $region4: #{qh2o_attention_forward.1} parent=1 // loop_header_branch
      %20 = sbr.rel (%p18) target = $region8
    $region5: #{qh2o_attention_forward.1} parent=1 // loop_body
      %s22 = ssub.s32 %s17, 1
      %s23 = ssub.s32 %s17, 2
      %s24 = sadd.s32 %s17, 1
      %s25 = ssub.s32 %s17, %s24
      %p26 = scmp.eq.s32.totalorder %s25, 0
      %s28 = sadd.s32 %s27, 1
      %s29 = scalar_select %p26, %s27, %s28
      %p32 = pneg %p26
      %p33 = scmp.eq.s32.totalorder %s17, 1
      %p34 = por %p32, %p33
      %p35 = scmp.ne.s32.totalorder %s27, %s30
      %p36 = scmp.eq.s32.totalorder %s17, 0
      %p37 = por %p35, %p36
      %p38 = scmp.ne.s32.totalorder %s27, %s30
      %p39 = scmp.eq.s32.totalorder %s22, 1
      %p40 = por %p38, %p39
      %p41 = scmp.ne.s32.totalorder %s30, %s31
      %p42 = scmp.eq.s32.totalorder %s22, 0
      %p43 = por %p41, %p42
      %p44 = scmp.ne.s32.totalorder %s30, %s31
      %p45 = scmp.eq.s32.totalorder %s23, 1
      %p46 = por %p44, %p45
      %p48 = scmp.ne.s32.totalorder %s31, %s47
      %p49 = scmp.eq.s32.totalorder %s23, 0
      %p50 = por %p48, %p49
      %s52 = sadd.s32 %s51, 1
      %p55 = scmp.eq.s32.totalorder %s17, 1
      %p56 = scmp.ne.s32.totalorder %s51, %s53
      %p57 = scmp.eq.s32.totalorder %s17, 0
      %p58 = por %p56, %p57
      %p59 = scmp.ne.s32.totalorder %s51, %s53
      %p60 = scmp.eq.s32.totalorder %s22, 1
      %p61 = por %p59, %p60
      %p62 = scmp.ne.s32.totalorder %s53, %s54
      %p63 = scmp.eq.s32.totalorder %s22, 0
      %p64 = por %p62, %p63
      %p65 = scmp.ne.s32.totalorder %s53, %s54
      %p66 = scmp.eq.s32.totalorder %s23, 1
      %p67 = por %p65, %p66
      %p69 = scmp.ne.s32.totalorder %s54, %s68
      %p70 = scmp.eq.s32.totalorder %s23, 0
      %p71 = por %p69, %p70
      %s73 = sadd.s32 %s72, 1
      %p76 = scmp.eq.s32.totalorder %s17, 1
      %p77 = scmp.ne.s32.totalorder %s72, %s74
      %p78 = scmp.eq.s32.totalorder %s17, 0
      %p79 = por %p77, %p78
      %p80 = scmp.ne.s32.totalorder %s72, %s74
      %p81 = scmp.eq.s32.totalorder %s22, 1
      %p82 = por %p80, %p81
      %p83 = scmp.ne.s32.totalorder %s74, %s75
      %p84 = scmp.eq.s32.totalorder %s22, 0
      %p85 = por %p83, %p84
      %p86 = scmp.ne.s32.totalorder %s74, %s75
      %p87 = scmp.eq.s32.totalorder %s23, 1
      %p88 = por %p86, %p87
      %p90 = scmp.ne.s32.totalorder %s75, %s89
      %p91 = scmp.eq.s32.totalorder %s23, 0
      %p92 = por %p90, %p91
      %s94 = sadd.s32 %s93, 1
      %p97 = scmp.eq.s32.totalorder %s17, 1
      %p98 = scmp.ne.s32.totalorder %s93, %s95
      %p99 = scmp.eq.s32.totalorder %s17, 0
      %p100 = por %p98, %p99
      %p101 = scmp.ne.s32.totalorder %s93, %s95
      %p102 = scmp.eq.s32.totalorder %s22, 1
      %p103 = por %p101, %p102
      %p104 = scmp.ne.s32.totalorder %s95, %s96
      %p105 = scmp.eq.s32.totalorder %s22, 0
      %p106 = por %p104, %p105
      %p107 = scmp.ne.s32.totalorder %s95, %s96
      %p108 = scmp.eq.s32.totalorder %s23, 1
      %p109 = por %p107, %p108
      %p111 = scmp.ne.s32.totalorder %s96, %s110
      %p112 = scmp.eq.s32.totalorder %s23, 0
      %p113 = por %p111, %p112
      %s115 = sadd.s32 %s114, 1
      %p118 = scmp.eq.s32.totalorder %s17, 1
      %p119 = scmp.ne.s32.totalorder %s114, %s116
      %p120 = scmp.eq.s32.totalorder %s17, 0
      %p121 = por %p119, %p120
      %p122 = scmp.ne.s32.totalorder %s114, %s116
      %p123 = scmp.eq.s32.totalorder %s22, 1
      %p124 = por %p122, %p123
      %p125 = scmp.ne.s32.totalorder %s116, %s117
      %p126 = scmp.eq.s32.totalorder %s22, 0
      %p127 = por %p125, %p126
      %p128 = scmp.ne.s32.totalorder %s116, %s117
      %p129 = scmp.eq.s32.totalorder %s23, 1
      %p130 = por %p128, %p129
      %p132 = scmp.ne.s32.totalorder %s117, %s131
      %p133 = scmp.eq.s32.totalorder %s23, 0
      %p134 = por %p132, %p133
      %s136 = sadd.s32 %s135, 1
      %p139 = scmp.eq.s32.totalorder %s17, 1
      %p140 = scmp.ne.s32.totalorder %s135, %s137
      %p141 = scmp.eq.s32.totalorder %s17, 0
      %p142 = por %p140, %p141
      %p143 = scmp.ne.s32.totalorder %s135, %s137
      %p144 = scmp.eq.s32.totalorder %s22, 1
      %p145 = por %p143, %p144
      %p146 = scmp.ne.s32.totalorder %s137, %s138
      %p147 = scmp.eq.s32.totalorder %s22, 0
      %p148 = por %p146, %p147
      %p149 = scmp.ne.s32.totalorder %s137, %s138
      %p150 = scmp.eq.s32.totalorder %s23, 1
      %p151 = por %p149, %p150
      %p153 = scmp.ne.s32.totalorder %s138, %s152
      %p154 = scmp.eq.s32.totalorder %s23, 0
      %p155 = por %p153, %p154
      %s156 = ssub.s32 %s17, %s24
      %p157 = scmp.eq.s32.totalorder %s156, 0
      %s159 = sadd.s32 %s158, 1
      %s160 = scalar_select %p157, %s158, %s159
      %p163 = pneg %p157
      %p164 = scmp.eq.s32.totalorder %s17, 1
      %p165 = por %p163, %p164
      %p166 = scmp.ne.s32.totalorder %s158, %s161
      %p167 = scmp.eq.s32.totalorder %s17, 0
      %p168 = por %p166, %p167
      %p169 = scmp.ne.s32.totalorder %s158, %s161
      %p170 = scmp.eq.s32.totalorder %s22, 1
      %p171 = por %p169, %p170
      %p172 = scmp.ne.s32.totalorder %s161, %s162
      %p173 = scmp.eq.s32.totalorder %s22, 0
      %p174 = por %p172, %p173
      %p175 = scmp.ne.s32.totalorder %s161, %s162
      %p176 = scmp.eq.s32.totalorder %s23, 1
      %p177 = por %p175, %p176
      %p179 = scmp.ne.s32.totalorder %s162, %s178
      %p180 = scmp.eq.s32.totalorder %s23, 0
      %p181 = por %p179, %p180
      %s182 = ssub.s32 %s17, %s24
      %p183 = scmp.eq.s32.totalorder %s182, 0
      %s185 = sadd.s32 %s184, 1
      %s186 = scalar_select %p183, %s184, %s185
      %p189 = pneg %p183
      %p190 = scmp.eq.s32.totalorder %s17, 1
      %p191 = por %p189, %p190
      %p192 = scmp.ne.s32.totalorder %s184, %s187
      %p193 = scmp.eq.s32.totalorder %s17, 0
      %p194 = por %p192, %p193
      %p195 = scmp.ne.s32.totalorder %s184, %s187
      %p196 = scmp.eq.s32.totalorder %s22, 1
      %p197 = por %p195, %p196
      %p198 = scmp.ne.s32.totalorder %s187, %s188
      %p199 = scmp.eq.s32.totalorder %s22, 0
      %p200 = por %p198, %p199
      %p201 = scmp.ne.s32.totalorder %s187, %s188
      %p202 = scmp.eq.s32.totalorder %s23, 1
      %p203 = por %p201, %p202
      %p205 = scmp.ne.s32.totalorder %s188, %s204
      %p206 = scmp.eq.s32.totalorder %s23, 0
      %p207 = por %p205, %p206
      %p208 = scmp.le.s32.totalorder 1, %s17
      %p209 = scmp.lt.s32.totalorder %s17, 3
      %p210 = pnand %p208, %p209
      %p211 = pneg %p210
      // Predicated region
      $region9: #{qh2o_attention_forward.1} parent=5 // pred_check
        _
      $region10: #{qh2o_attention_forward.1} parent=5 // pred_check_branch
        %213 = sbr.rel (%p210) target = $region12
      $region11: #{qh2o_attention_forward.1} parent=5 // pred_region
        %s214 = ssub.s32 %s17, 1
        // Predicated region
        $region13: #{qh2o_attention_forward.1} parent=11 // pred_check
          %p215 = pneg %p64
        $region14: #{qh2o_attention_forward.1} parent=11 // pred_check_branch
          %217 = sbr.rel (%p215) target = $region16
        $region15: #{qh2o_attention_forward.1} parent=11 // pred_region
          _
        $region16: #{qh2o_attention_forward.1} parent=11 // pred_fallthru
          _
        // Predicated region
        $region17: #{qh2o_attention_forward.1} parent=11 // pred_check
          %p218 = pneg %p85
        $region18: #{qh2o_attention_forward.1} parent=11 // pred_check_branch
          %220 = sbr.rel (%p218) target = $region20
        $region19: #{qh2o_attention_forward.1} parent=11 // pred_region
          _
        $region20: #{qh2o_attention_forward.1} parent=11 // pred_fallthru
          _
        // Predicated region
        $region21: #{qh2o_attention_forward.1} parent=11 // pred_check
          %p221 = pneg %p106
        $region22: #{qh2o_attention_forward.1} parent=11 // pred_check_branch
          %223 = sbr.rel (%p221) target = $region24
        $region23: #{qh2o_attention_forward.1} parent=11 // pred_region
          _
        $region24: #{qh2o_attention_forward.1} parent=11 // pred_fallthru
          _
        // Predicated region
        $region25: #{qh2o_attention_forward.1} parent=11 // pred_check
          %p224 = pneg %p127
        $region26: #{qh2o_attention_forward.1} parent=11 // pred_check_branch
          %226 = sbr.rel (%p224) target = $region28
        $region27: #{qh2o_attention_forward.1} parent=11 // pred_region
          _
        $region28: #{qh2o_attention_forward.1} parent=11 // pred_fallthru
          _
        // Predicated region
        $region29: #{qh2o_attention_forward.1} parent=11 // pred_check
          %p227 = pneg %p148
        $region30: #{qh2o_attention_forward.1} parent=11 // pred_check_branch
          %229 = sbr.rel (%p227) target = $region32
        $region31: #{qh2o_attention_forward.1} parent=11 // pred_region
          _
        $region32: #{qh2o_attention_forward.1} parent=11 // pred_fallthru
          _
      $region12: #{qh2o_attention_forward.1} parent=5 // pred_fallthru
        _
      %p230 = scmp.lt.s32.totalorder %s17, 2
      // Predicated region
      $region33: #{qh2o_attention_forward.1} parent=5 // pred_check
        %p231 = pneg %p230
      $region34: #{qh2o_attention_forward.1} parent=5 // pred_check_branch
        %233 = sbr.rel (%p231) target = $region36
      $region35: #{qh2o_attention_forward.1} parent=5 // pred_region
        // Predicated region
        $region37: #{qh2o_attention_forward.1} parent=35 // pred_check
          %p234 = pneg %p37
        $region38: #{qh2o_attention_forward.1} parent=35 // pred_check_branch
          %236 = sbr.rel (%p234) target = $region40
        $region39: #{qh2o_attention_forward.1} parent=35 // pred_region
          %p237 = scmp.lt.s32.totalorder %s17, 1
          %s238 = scalar_select %p237, %s17, 1
          %s239 = smul.addr %s238, 8
          %s240 = scalar_lea.vmem %s0, %s239
        $region40: #{qh2o_attention_forward.1} parent=35 // pred_fallthru
          _
      $region36: #{qh2o_attention_forward.1} parent=5 // pred_fallthru
        _
      %p241 = scmp.le.s32.totalorder 1, %s17
      %p242 = scmp.lt.s32.totalorder %s17, 3
      %p243 = pnand %p241, %p242
      %p244 = pneg %p243
      // Predicated region
      $region41: #{qh2o_attention_forward.1} parent=5 // pred_check
        _
      $region42: #{qh2o_attention_forward.1} parent=5 // pred_check_branch
        %246 = sbr.rel (%p243) target = $region44
      $region43: #{qh2o_attention_forward.1} parent=5 // pred_region
        %s247 = ssub.s32 %s17, 1
        %p248 = scmp.lt.s32.totalorder %s22, 1
        %s249 = scalar_select %p248, %s22, 1
        %s250 = smul.addr %s249, 8
        %s251 = scalar_lea.vmem %s0, %s250
        %p252 = pneg %p43
        %p253 = pneg %p40
        %p254 = pneg %p64
        %p255 = pneg %p61
        %p256 = pneg %p85
        %p257 = pneg %p82
        %p258 = pneg %p106
        %p259 = pneg %p103
        %p260 = pneg %p127
        %p261 = pneg %p124
        %p262 = pneg %p148
        %p263 = pneg %p145
        %p264 = pneg %p174
        %p265 = pneg %p171
        %s266 = sand.u32 %s161, 1
        %s267 = scalar_lea.sflag [#allocation3], %s266
        %s268 = sand.u32 %s161, 1
        %s269 = smul.addr %s268, 8
        %s270 = scalar_lea.vmem [#allocation2], %s269
        %p271 = pneg %p200
        %p272 = pneg %p197
        %p273 = scmp.lt.s32.totalorder %s22, 1
        %s274 = scalar_select %p273, %s22, 1
        %s275 = smul.addr %s274, 4
        %s276 = scalar_lea.vmem %s7, %s275
        %p277 = scmp.lt.s32.totalorder %s22, 1
        %s278 = scalar_select %p277, %s22, 1
        %s279 = smul.addr %s278, 8
        %s280 = scalar_lea.vmem %s0, %s279
        %p281 = scmp.lt.s32.totalorder %s22, 1
        %s282 = scalar_select %p281, %s22, 1
        %s283 = smul.addr %s282, 4
        %s284 = scalar_lea.vmem %s7, %s283
        %v286 = vld [vmem:[%s280] sm:$0xff]
        %v287 = vld [vmem:[%s1] sm:$0xff]
        %v288 = vld [vmem:[%s1 + $0x8] sm:$0xff]
        %v289 = vld [vmem:[%s1 + $0x10] sm:$0xff]
        %v290 = vld [vmem:[%s1 + $0x18] sm:$0xff]
        %v291 = vld [vmem:[%s1 + $0x20] sm:$0xff]
        %v292 = vld [vmem:[%s1 + $0x28] sm:$0xff]
        %v293 = vld [vmem:[%s1 + $0x30] sm:$0xff]
        %v294 = vld [vmem:[%s1 + $0x38] sm:$0xff]
        %v295 = vld [vmem:[%s1 + $0x40] sm:$0xff]
        %v296 = vld [vmem:[%s1 + $0x48] sm:$0xff]
        %v297 = vld [vmem:[%s1 + $0x50] sm:$0xff]
        %v298 = vld [vmem:[%s1 + $0x58] sm:$0xff]
        %v299 = vld [vmem:[%s1 + $0x60] sm:$0xff]
        %v300 = vld [vmem:[%s1 + $0x68] sm:$0xff]
        %v301 = vld [vmem:[%s1 + $0x70] sm:$0xff]
        %v302 = vld [vmem:[%s1 + $0x78] sm:$0xff]
        %v303 = vld [vmem:[%s1 + $0x80] sm:$0xff]
        %v304 = vld [vmem:[%s1 + $0x88] sm:$0xff]
        %v305 = vld [vmem:[%s1 + $0x90] sm:$0xff]
        %v306 = vld [vmem:[%s1 + $0x98] sm:$0xff]
        %v307 = vld [vmem:[%s1 + $0xa0] sm:$0xff]
        %v308 = vld [vmem:[%s1 + $0xa8] sm:$0xff]
        %v309 = vld [vmem:[%s1 + $0xb0] sm:$0xff]
        %v310 = vld [vmem:[%s1 + $0xb8] sm:$0xff]
        %v311 = vld [vmem:[%s1 + $0xc0] sm:$0xff]
        %v312 = vld [vmem:[%s1 + $0xc8] sm:$0xff]
        %v313 = vld [vmem:[%s1 + $0xd0] sm:$0xff]
        %v314 = vld [vmem:[%s1 + $0xd8] sm:$0xff]
        %v315 = vld [vmem:[%s1 + $0xe0] sm:$0xff]
        %v316 = vld [vmem:[%s1 + $0xe8] sm:$0xff]
        %v317 = vld [vmem:[%s1 + $0xf0] sm:$0xff]
        %v318 = vld [vmem:[%s1 + $0xf8] sm:$0xff]
        %v319 = vld [vmem:[%s2] sm:$0xff]
        %v320 = vld [vmem:[%s2 + $0x8] sm:$0xff]
        %v321 = vld [vmem:[%s2 + $0x10] sm:$0xff]
        %v322 = vld [vmem:[%s2 + $0x18] sm:$0xff]
        %v323 = vld [vmem:[%s2 + $0x20] sm:$0xff]
        %v324 = vld [vmem:[%s2 + $0x28] sm:$0xff]
        %v325 = vld [vmem:[%s2 + $0x30] sm:$0xff]
        %v326 = vld [vmem:[%s2 + $0x38] sm:$0xff]
        %v327 = vld [vmem:[%s2 + $0x40] sm:$0xff]
        %v328 = vld [vmem:[%s2 + $0x48] sm:$0xff]
        %v329 = vld [vmem:[%s2 + $0x50] sm:$0xff]
        %v330 = vld [vmem:[%s2 + $0x58] sm:$0xff]
        %v331 = vld [vmem:[%s2 + $0x60] sm:$0xff]
        %v332 = vld [vmem:[%s2 + $0x68] sm:$0xff]
        %v333 = vld [vmem:[%s2 + $0x70] sm:$0xff]
        %v334 = vld [vmem:[%s2 + $0x78] sm:$0xff]
        %v335 = vld [vmem:[%s3] sm:$0xff]
        %v336 = vld [vmem:[%s4] sm:$0xff]
        %v337 = vld [vmem:[%s5] sm:$0xff]
        %v338 = vld [vmem:[%s5 + $0x8] sm:$0xff]
        %v339 = vld [vmem:[%s5 + $0x10] sm:$0xff]
        %v340 = vld [vmem:[%s5 + $0x18] sm:$0xff]
        %341 = vmatprep.subr.mxu0 %v288
        %342 = vmatpush1.msra.mxu0 %v287
        %343 = vmatprep.subr.mxu0 %v290
        %344 = vmatpush1.msra.mxu0 %v289
        %345 = vmatprep.subr.mxu0 %v292
        %346 = vmatpush1.msra.mxu0 %v291
        %347 = vmatprep.subr.mxu0 %v294
        %348 = vmatpush1.msra.mxu0 %v293
        %349 = vmatprep.subr.mxu0 %v296
        %350 = vmatpush1.msra.mxu0 %v295
        %351 = vmatprep.subr.mxu0 %v298
        %352 = vmatpush1.msra.mxu0 %v297
        %353 = vmatprep.subr.mxu0 %v300
        %354 = vmatpush1.msra.mxu0 %v299
        %355 = vmatprep.subr.mxu0 %v302
        %356 = vmatpush1.msra.mxu0 %v301
        %357 = vmatprep.subr.mxu0 %v304
        %358 = vmatpush1.msra.mxu0 %v303
        %359 = vmatprep.subr.mxu0 %v306
        %360 = vmatpush1.msra.mxu0 %v305
        %361 = vmatprep.subr.mxu0 %v308
        %362 = vmatpush1.msra.mxu0 %v307
        %363 = vmatprep.subr.mxu0 %v310
        %364 = vmatpush1.msra.mxu0 %v309
        %365 = vmatprep.subr.mxu0 %v312
        %366 = vmatpush1.msra.mxu0 %v311
        %367 = vmatprep.subr.mxu0 %v314
        %368 = vmatpush1.msra.mxu0 %v313
        %369 = vmatprep.subr.mxu0 %v316
        %370 = vmatpush1.msra.mxu0 %v315
        %371 = vmatprep.subr.mxu0 %v318
        %372 = vmatpush1.msra.mxu0 %v317
        %373 = vmatprep.subr.mxu0 0.0
        %374 = vmatpush1.msra.mxu0 0.0
        %375 = vmatprep.subr.mxu0 0.0
        %376 = vmatpush1.msra.mxu0 0.0
        %377 = vmatprep.subr.mxu0 0.0
        %378 = vmatpush1.msra.mxu0 0.0
        %379 = vmatprep.subr.mxu0 0.0
        %380 = vmatpush1.msra.mxu0 0.0
        %381 = vmatprep.subr.mxu0 0.0
        %382 = vmatpush1.msra.mxu0 0.0
        %383 = vmatprep.subr.mxu0 0.0
        %384 = vmatpush1.msra.mxu0 0.0
        %385 = vmatprep.subr.mxu0 0.0
        %386 = vmatpush1.msra.mxu0 0.0
        %387 = vmatprep.subr.mxu0 0.0
        %388 = vmatpush1.msra.mxu0 0.0
        %389 = vmatprep.subr.mxu0 0.0
        %390 = vmatpush1.msra.mxu0 0.0
        %391 = vmatprep.subr.mxu0 0.0
        %392 = vmatpush1.msra.mxu0 0.0
        %393 = vmatprep.subr.mxu0 0.0
        %394 = vmatpush1.msra.mxu0 0.0
        %395 = vmatprep.subr.mxu0 0.0
        %396 = vmatpush1.msra.mxu0 0.0
        %397 = vmatprep.subr.mxu0 0.0
        %398 = vmatpush1.msra.mxu0 0.0
        %399 = vmatprep.subr.mxu0 0.0
        %400 = vmatpush1.msra.mxu0 0.0
        %401 = vmatprep.subr.mxu0 0.0
        %402 = vmatpush1.msra.mxu0 0.0
        %403 = vmatprep.subr.mxu0 0.0
        %404 = vmatpush1.msra.mxu0 0.0
        %405 = vmatprep.mubr.f32.mxu0 0.0
        %406 = vmatmul.mubr.f32.gmra.mrb[0].mxu0 %v286
        %v407 = vpop.f32.mrb[0].mxu0
        %v408 = vadd.f32 0.0, %v407
        %v409 = vpop.f32.mrb[0].mxu0
        %v410 = vadd.f32 0.0, %v409
        %411 = vdwg.mxu0
        %v412 = vlaneseq
        %v413 = vshrl.u32 %v412, 7
        %v414 = vlaneseq
        %v415 = vand.u32 %v414, 127
        %vm416 = vcmp.le.s32.totalorder %v415, %v413
        %v417 = vmul.f32 %v410, %v335
        %vm418 = vcmask 261120
        %v420 = vsel %vm418, %v410, 0
        %422 = vmatprep.subr.mxu0 0.0
        %423 = vmatpush1.msra.mxu0 %v337
        %424 = vmatprep.subr.mxu0 0.0
        %425 = vmatpush1.msra.mxu0 %v338
        %426 = vmatprep.subr.mxu0 0.0
        %427 = vmatpush1.msra.mxu0 %v339
        %428 = vmatprep.subr.mxu0 0.0
        %429 = vmatpush1.msra.mxu0 %v340
        %430 = vmatprep.subr.mxu0 0.0
        %431 = vmatpush1.msra.mxu0 0.0
        %432 = vmatprep.subr.mxu0 0.0
        %433 = vmatpush1.msra.mxu0 0.0
        %434 = vmatprep.subr.mxu0 0.0
        %435 = vmatpush1.msra.mxu0 0.0
        %436 = vmatprep.subr.mxu0 0.0
        %437 = vmatpush1.msra.mxu0 0.0
        %438 = vmatprep.subr.mxu0 0.0
        %439 = vmatpush1.msra.mxu0 0.0
        %440 = vmatprep.subr.mxu0 0.0
        %441 = vmatpush1.msra.mxu0 0.0
        %442 = vmatprep.subr.mxu0 0.0
        %443 = vmatpush1.msra.mxu0 0.0
        %444 = vmatprep.subr.mxu0 0.0
        %445 = vmatpush1.msra.mxu0 0.0
        %446 = vmatprep.subr.mxu0 0.0
        %447 = vmatpush1.msra.mxu0 0.0
        %448 = vmatprep.subr.mxu0 0.0
        %449 = vmatpush1.msra.mxu0 0.0
        %450 = vmatprep.subr.mxu0 0.0
        %451 = vmatpush1.msra.mxu0 0.0
        %452 = vmatprep.subr.mxu0 0.0
        %453 = vmatpush1.msra.mxu0 0.0
        %454 = vmatprep.subr.mxu0 0.0
        %455 = vmatpush1.msra.mxu0 0.0
        %456 = vmatprep.subr.mxu0 0.0
        %457 = vmatpush1.msra.mxu0 0.0
        %458 = vmatprep.subr.mxu0 0.0
        %459 = vmatpush1.msra.mxu0 0.0
        %460 = vmatprep.subr.mxu0 0.0
        %461 = vmatpush1.msra.mxu0 0.0
        %462 = vmatprep.subr.mxu0 0.0
        %463 = vmatpush1.msra.mxu0 0.0
        %464 = vmatprep.subr.mxu0 0.0
        %465 = vmatpush1.msra.mxu0 0.0
        %466 = vmatprep.subr.mxu0 0.0
        %467 = vmatpush1.msra.mxu0 0.0
        %468 = vmatprep.subr.mxu0 0.0
        %469 = vmatpush1.msra.mxu0 0.0
        %470 = vmatprep.subr.mxu0 0.0
        %471 = vmatpush1.msra.mxu0 0.0
        %472 = vmatprep.subr.mxu0 0.0
        %473 = vmatpush1.msra.mxu0 0.0
        %474 = vmatprep.subr.mxu0 0.0
        %475 = vmatpush1.msra.mxu0 0.0
        %476 = vmatprep.subr.mxu0 0.0
        %477 = vmatpush1.msra.mxu0 0.0
        %478 = vmatprep.subr.mxu0 0.0
        %479 = vmatpush1.msra.mxu0 0.0
        %480 = vmatprep.subr.mxu0 0.0
        %481 = vmatpush1.msra.mxu0 0.0
        %482 = vmatprep.subr.mxu0 0.0
        %483 = vmatpush1.msra.mxu0 0.0
        %484 = vmatprep.subr.mxu0 0.0
        %485 = vmatpush1.msra.mxu0 0.0
        %486 = vmatprep.mubr.f32.mxu0 0.0
        %487 = vmatmul.mubr.f32.gmra.mrb[0].mxu0 %v420
        %v488 = vpop.f32.mrb[0].mxu0
        %v489 = vadd.f32 0.0, %v488
        %v490 = vpop.f32.mrb[0].mxu0
        %491 = vdwg.mxu0
        %v492 = vmul.f32 %v489, %v336
        %v493 = vadd.f32 %v417, %v492
        %v494 = vpack.c.bf16 %v493, %v493
        %v495 = vpack.c.bf16 %v410, %v410
        %v496 = vmul.f32 %v408, %v335
        %v498 = vsel %vm418, %v408, 0
        %500 = vmatprep.subr.mxu0 0.0
        %501 = vmatpush1.msra.mxu0 %v337
        %502 = vmatprep.subr.mxu0 0.0
        %503 = vmatpush1.msra.mxu0 %v338
        %504 = vmatprep.subr.mxu0 0.0
        %505 = vmatpush1.msra.mxu0 %v339
        %506 = vmatprep.subr.mxu0 0.0
        %507 = vmatpush1.msra.mxu0 %v340
        %508 = vmatprep.subr.mxu0 0.0
        %509 = vmatpush1.msra.mxu0 0.0
        %510 = vmatprep.subr.mxu0 0.0
        %511 = vmatpush1.msra.mxu0 0.0
        %512 = vmatprep.subr.mxu0 0.0
        %513 = vmatpush1.msra.mxu0 0.0
        %514 = vmatprep.subr.mxu0 0.0
        %515 = vmatpush1.msra.mxu0 0.0
        %516 = vmatprep.subr.mxu0 0.0
        %517 = vmatpush1.msra.mxu0 0.0
        %518 = vmatprep.subr.mxu0 0.0
        %519 = vmatpush1.msra.mxu0 0.0
        %520 = vmatprep.subr.mxu0 0.0
        %521 = vmatpush1.msra.mxu0 0.0
        %522 = vmatprep.subr.mxu0 0.0
        %523 = vmatpush1.msra.mxu0 0.0
        %524 = vmatprep.subr.mxu0 0.0
        %525 = vmatpush1.msra.mxu0 0.0
        %526 = vmatprep.subr.mxu0 0.0
        %527 = vmatpush1.msra.mxu0 0.0
        %528 = vmatprep.subr.mxu0 0.0
        %529 = vmatpush1.msra.mxu0 0.0
        %530 = vmatprep.subr.mxu0 0.0
        %531 = vmatpush1.msra.mxu0 0.0
        %532 = vmatprep.subr.mxu0 0.0
        %533 = vmatpush1.msra.mxu0 0.0
        %534 = vmatprep.subr.mxu0 0.0
        %535 = vmatpush1.msra.mxu0 0.0
        %536 = vmatprep.subr.mxu0 0.0
        %537 = vmatpush1.msra.mxu0 0.0
        %538 = vmatprep.subr.mxu0 0.0
        %539 = vmatpush1.msra.mxu0 0.0
        %540 = vmatprep.subr.mxu0 0.0
        %541 = vmatpush1.msra.mxu0 0.0
        %542 = vmatprep.subr.mxu0 0.0
        %543 = vmatpush1.msra.mxu0 0.0
        %544 = vmatprep.subr.mxu0 0.0
        %545 = vmatpush1.msra.mxu0 0.0
        %546 = vmatprep.subr.mxu0 0.0
        %547 = vmatpush1.msra.mxu0 0.0
        %548 = vmatprep.subr.mxu0 0.0
        %549 = vmatpush1.msra.mxu0 0.0
        %550 = vmatprep.subr.mxu0 0.0
        %551 = vmatpush1.msra.mxu0 0.0
        %552 = vmatprep.subr.mxu0 0.0
        %553 = vmatpush1.msra.mxu0 0.0
        %554 = vmatprep.subr.mxu0 0.0
        %555 = vmatpush1.msra.mxu0 0.0
        %556 = vmatprep.subr.mxu0 0.0
        %557 = vmatpush1.msra.mxu0 0.0
        %558 = vmatprep.subr.mxu0 0.0
        %559 = vmatpush1.msra.mxu0 0.0
        %560 = vmatprep.subr.mxu0 0.0
        %561 = vmatpush1.msra.mxu0 0.0
        %562 = vmatprep.subr.mxu0 0.0
        %563 = vmatpush1.msra.mxu0 0.0
        %564 = vmatprep.mubr.f32.mxu0 0.0
        %565 = vmatmul.mubr.f32.gmra.mrb[0].mxu0 %v498
        %v566 = vpop.f32.mrb[0].mxu0
        %v567 = vadd.f32 0.0, %v566
        %v568 = vpop.f32.mrb[0].mxu0
        %569 = vdwg.mxu0
        %v570 = vmul.f32 %v567, %v336
        %v571 = vadd.f32 %v496, %v570
        %v572 = vpack.c.bf16 %v571, %v571
        %v574 = vsel %vm418, %v572, 0
        %v577 = vsel %vm418, %v494, 0
        %579 = vmatprep.subr.bf16.mxu0 0
        %580 = vmatpush1.bf16.xpose.msra.mxu0 %v577
        %581 = vmatprep.subr.bf16.mxu0 0
        %582 = vmatpush1.bf16.xpose.msra.mxu0 0
        %583 = vmatprep.subr.bf16.mxu0 0
        %584 = vmatpush1.bf16.xpose.msra.mxu0 0
        %585 = vmatprep.subr.bf16.mxu0 0
        %586 = vmatpush1.bf16.xpose.msra.mxu0 0
        %587 = vmatprep.subr.bf16.mxu0 0
        %588 = vmatpush1.bf16.xpose.msra.mxu0 0
        %589 = vmatprep.subr.bf16.mxu0 0
        %590 = vmatpush1.bf16.xpose.msra.mxu0 0
        %591 = vmatprep.subr.bf16.mxu0 0
        %592 = vmatpush1.bf16.xpose.msra.mxu0 0
        %593 = vmatprep.subr.bf16.mxu0 0
        %594 = vmatpush1.bf16.xpose.msra.mxu0 0
        %595 = vmatprep.subr.bf16.mxu0 0
        %596 = vmatpush1.bf16.xpose.msra.mxu0 0
        %597 = vmatprep.subr.bf16.mxu0 0
        %598 = vmatpush1.bf16.xpose.msra.mxu0 0
        %599 = vmatprep.subr.bf16.mxu0 0
        %600 = vmatpush1.bf16.xpose.msra.mxu0 0
        %601 = vmatprep.subr.bf16.mxu0 0
        %602 = vmatpush1.bf16.xpose.msra.mxu0 0
        %603 = vmatprep.subr.bf16.mxu0 0
        %604 = vmatpush1.bf16.xpose.msra.mxu0 0
        %605 = vmatprep.subr.bf16.mxu0 0
        %606 = vmatpush1.bf16.xpose.msra.mxu0 0
        %607 = vmatprep.subr.bf16.mxu0 0
        %608 = vmatpush1.bf16.xpose.msra.mxu0 0
        %609 = vmatprep.subr.bf16.mxu0 0
        %610 = vmatpush1.bf16.xpose.msra.mxu0 0
        %611 = vmatprep.mubr.bf16.mxu0 0
        %612 = vmatmul.mubr.bf16.gmra.mrb[0].mxu0 %v574
        %v613 = vpop.f32.mrb[0].mxu0
        %v614 = vadd.f32 0.0, %v613
        %v615 = vpop.f32.mrb[0].mxu0
        %v616 = vpop.f32.mrb[0].mxu0
        %v617 = vpop.f32.mrb[0].mxu0
        %618 = vdwg.mxu0
        %v619 = vmul.f32 %v614, 0.17677669
        %v620 = vsel %vm416, %v619, -3.4028235e+38
        %vm621 = vcmask 64512
        %v622 = vsel %vm621, %v620, -inf
        %623 = vmax.xlane.f32.xlu0 %v622
        %v624 = vpop.xlane.xlu0 %623
        %v625 = vsub.f32 %v620, %v624
        %v626 = vmul.f32 %v625, 1.442695
        %v627 = vpow.pop %v626
        %v628 = vsel %vm621, %v627, 0.0
        %629 = vadd.xlane.f32.xlu0 %v628
        %v630 = vpop.xlane.xlu0 %629
        %v631 = vrcp.pop %v630
        %v632 = vmul.f32 %v627, %v631
        %v633 = vsel %vm621, %v632, 0.0
        %v634 = vrot.slane %v633, 4
        %v635 = vadd.f32 %v633, %v634
        %v636 = vrot.slane %v635, 2
        %v637 = vadd.f32 %v635, %v636
        %v638 = vrot.slane %v637, 1
        %v639 = vadd.f32 %v637, %v638
        %v640 = vpack.c.bf16 %v632, %v632
        %642 = vrot.lane.b32.xlu0 %v495, 64
        %v643 = vpop.permute.xlu0 %642
        %v645 = vsel %vm621, %v640, 0
        %vm647 = vcmask 1043456
        %v649 = vsel %vm647, %v643, 0
        %651 = vmatprep.subr.bf16.mxu0 0
        %652 = vmatpush1.bf16.msra.mxu0 %v649
        %653 = vmatprep.subr.bf16.mxu0 0
        %654 = vmatpush1.bf16.msra.mxu0 0
        %655 = vmatprep.subr.bf16.mxu0 0
        %656 = vmatpush1.bf16.msra.mxu0 0
        %657 = vmatprep.subr.bf16.mxu0 0
        %658 = vmatpush1.bf16.msra.mxu0 0
        %659 = vmatprep.subr.bf16.mxu0 0
        %660 = vmatpush1.bf16.msra.mxu0 0
        %661 = vmatprep.subr.bf16.mxu0 0
        %662 = vmatpush1.bf16.msra.mxu0 0
        %663 = vmatprep.subr.bf16.mxu0 0
        %664 = vmatpush1.bf16.msra.mxu0 0
        %665 = vmatprep.subr.bf16.mxu0 0
        %666 = vmatpush1.bf16.msra.mxu0 0
        %667 = vmatprep.subr.bf16.mxu0 0
        %668 = vmatpush1.bf16.msra.mxu0 0
        %669 = vmatprep.subr.bf16.mxu0 0
        %670 = vmatpush1.bf16.msra.mxu0 0
        %671 = vmatprep.subr.bf16.mxu0 0
        %672 = vmatpush1.bf16.msra.mxu0 0
        %673 = vmatprep.subr.bf16.mxu0 0
        %674 = vmatpush1.bf16.msra.mxu0 0
        %675 = vmatprep.subr.bf16.mxu0 0
        %676 = vmatpush1.bf16.msra.mxu0 0
        %677 = vmatprep.subr.bf16.mxu0 0
        %678 = vmatpush1.bf16.msra.mxu0 0
        %679 = vmatprep.subr.bf16.mxu0 0
        %680 = vmatpush1.bf16.msra.mxu0 0
        %681 = vmatprep.subr.bf16.mxu0 0
        %682 = vmatpush1.bf16.msra.mxu0 0
        %683 = vmatprep.mubr.bf16.mxu0 0
        %684 = vmatmul.mubr.bf16.gmra.mrb[0].mxu0 %v645
        %v685 = vpop.f32.mrb[0].mxu0
        %v686 = vadd.f32 0.0, %v685
        %v687 = vpop.f32.mrb[0].mxu0
        %v688 = vpop.f32.mrb[0].mxu0
        %v689 = vpop.f32.mrb[0].mxu0
        %690 = vdwg.mxu0
        %692 = vrot.lane.b32.xlu0 %v335, 32
        %v693 = vpop.permute.xlu0 %692
        %v695 = vmul.f32 %v408, %v693
        %696 = vrot.lane.b32.xlu0 %v408, 96
        %v697 = vpop.permute.xlu0 %696
        %v698 = vsel %vm418, %v697, 0
        %700 = vmatprep.subr.mxu0 0.0
        %701 = vmatpush1.msra.mxu0 %v337
        %702 = vmatprep.subr.mxu0 0.0
        %703 = vmatpush1.msra.mxu0 %v338
        %704 = vmatprep.subr.mxu0 0.0
        %705 = vmatpush1.msra.mxu0 %v339
        %706 = vmatprep.subr.mxu0 0.0
        %707 = vmatpush1.msra.mxu0 %v340
        %708 = vmatprep.subr.mxu0 0.0
        %709 = vmatpush1.msra.mxu0 0.0
        %710 = vmatprep.subr.mxu0 0.0
        %711 = vmatpush1.msra.mxu0 0.0
        %712 = vmatprep.subr.mxu0 0.0
        %713 = vmatpush1.msra.mxu0 0.0
        %714 = vmatprep.subr.mxu0 0.0
        %715 = vmatpush1.msra.mxu0 0.0
        %716 = vmatprep.subr.mxu0 0.0
        %717 = vmatpush1.msra.mxu0 0.0
        %718 = vmatprep.subr.mxu0 0.0
        %719 = vmatpush1.msra.mxu0 0.0
        %720 = vmatprep.subr.mxu0 0.0
        %721 = vmatpush1.msra.mxu0 0.0
        %722 = vmatprep.subr.mxu0 0.0
        %723 = vmatpush1.msra.mxu0 0.0
        %724 = vmatprep.subr.mxu0 0.0
        %725 = vmatpush1.msra.mxu0 0.0
        %726 = vmatprep.subr.mxu0 0.0
        %727 = vmatpush1.msra.mxu0 0.0
        %728 = vmatprep.subr.mxu0 0.0
        %729 = vmatpush1.msra.mxu0 0.0
        %730 = vmatprep.subr.mxu0 0.0
        %731 = vmatpush1.msra.mxu0 0.0
        %732 = vmatprep.subr.mxu0 0.0
        %733 = vmatpush1.msra.mxu0 0.0
        %734 = vmatprep.subr.mxu0 0.0
        %735 = vmatpush1.msra.mxu0 0.0
        %736 = vmatprep.subr.mxu0 0.0
        %737 = vmatpush1.msra.mxu0 0.0
        %738 = vmatprep.subr.mxu0 0.0
        %739 = vmatpush1.msra.mxu0 0.0
        %740 = vmatprep.subr.mxu0 0.0
        %741 = vmatpush1.msra.mxu0 0.0
        %742 = vmatprep.subr.mxu0 0.0
        %743 = vmatpush1.msra.mxu0 0.0
        %744 = vmatprep.subr.mxu0 0.0
        %745 = vmatpush1.msra.mxu0 0.0
        %746 = vmatprep.subr.mxu0 0.0
        %747 = vmatpush1.msra.mxu0 0.0
        %748 = vmatprep.subr.mxu0 0.0
        %749 = vmatpush1.msra.mxu0 0.0
        %750 = vmatprep.subr.mxu0 0.0
        %751 = vmatpush1.msra.mxu0 0.0
        %752 = vmatprep.subr.mxu0 0.0
        %753 = vmatpush1.msra.mxu0 0.0
        %754 = vmatprep.subr.mxu0 0.0
        %755 = vmatpush1.msra.mxu0 0.0
        %756 = vmatprep.subr.mxu0 0.0
        %757 = vmatpush1.msra.mxu0 0.0
        %758 = vmatprep.subr.mxu0 0.0
        %759 = vmatpush1.msra.mxu0 0.0
        %760 = vmatprep.subr.mxu0 0.0
        %761 = vmatpush1.msra.mxu0 0.0
        %762 = vmatprep.subr.mxu0 0.0
        %763 = vmatpush1.msra.mxu0 0.0
        %764 = vmatprep.mubr.f32.mxu0 0.0
        %765 = vmatmul.mubr.f32.gmra.mrb[0].mxu0 %v698
        %v766 = vpop.f32.mrb[0].mxu0
        %v767 = vadd.f32 0.0, %v766
        %v768 = vpop.f32.mrb[0].mxu0
        %769 = vdwg.mxu0
        %v770 = vmul.f32 %v767, %v336
        %772 = vrot.lane.b32.xlu0 %v770, 32
        %v773 = vpop.permute.xlu0 %772
        %v775 = vadd.f32 %v695, %v773
        %v776 = vpack.c.bf16 %v775, %v775
        %778 = vrot.lane.b32.xlu0 %v776, 96
        %v779 = vpop.permute.xlu0 %778
        %v781 = vsel %vm418, %v779, 0
        %783 = vmatprep.subr.bf16.mxu0 0
        %784 = vmatpush1.bf16.xpose.msra.mxu0 %v577
        %785 = vmatprep.subr.bf16.mxu0 0
        %786 = vmatpush1.bf16.xpose.msra.mxu0 0
        %787 = vmatprep.subr.bf16.mxu0 0
        %788 = vmatpush1.bf16.xpose.msra.mxu0 0
        %789 = vmatprep.subr.bf16.mxu0 0
        %790 = vmatpush1.bf16.xpose.msra.mxu0 0
        %791 = vmatprep.subr.bf16.mxu0 0
        %792 = vmatpush1.bf16.xpose.msra.mxu0 0
        %793 = vmatprep.subr.bf16.mxu0 0
        %794 = vmatpush1.bf16.xpose.msra.mxu0 0
        %795 = vmatprep.subr.bf16.mxu0 0
        %796 = vmatpush1.bf16.xpose.msra.mxu0 0
        %797 = vmatprep.subr.bf16.mxu0 0
        %798 = vmatpush1.bf16.xpose.msra.mxu0 0
        %799 = vmatprep.subr.bf16.mxu0 0
        %800 = vmatpush1.bf16.xpose.msra.mxu0 0
        %801 = vmatprep.subr.bf16.mxu0 0
        %802 = vmatpush1.bf16.xpose.msra.mxu0 0
        %803 = vmatprep.subr.bf16.mxu0 0
        %804 = vmatpush1.bf16.xpose.msra.mxu0 0
        %805 = vmatprep.subr.bf16.mxu0 0
        %806 = vmatpush1.bf16.xpose.msra.mxu0 0
        %807 = vmatprep.subr.bf16.mxu0 0
        %808 = vmatpush1.bf16.xpose.msra.mxu0 0
        %809 = vmatprep.subr.bf16.mxu0 0
        %810 = vmatpush1.bf16.xpose.msra.mxu0 0
        %811 = vmatprep.subr.bf16.mxu0 0
        %812 = vmatpush1.bf16.xpose.msra.mxu0 0
        %813 = vmatprep.subr.bf16.mxu0 0
        %814 = vmatpush1.bf16.xpose.msra.mxu0 0
        %815 = vmatprep.mubr.bf16.mxu0 0
        %816 = vmatmul.mubr.bf16.gmra.mrb[0].mxu0 %v781
        %v817 = vpop.f32.mrb[0].mxu0
        %v818 = vadd.f32 0.0, %v817
        %v819 = vpop.f32.mrb[0].mxu0
        %v820 = vpop.f32.mrb[0].mxu0
        %v821 = vpop.f32.mrb[0].mxu0
        %822 = vdwg.mxu0
        %v823 = vmul.f32 %v818, 0.17677669
        %v824 = vsel %vm416, %v823, -3.4028235e+38
        %v825 = vsel %vm621, %v824, -inf
        %826 = vmax.xlane.f32.xlu0 %v825
        %v827 = vpop.xlane.xlu0 %826
        %v828 = vsub.f32 %v824, %v827
        %v829 = vmul.f32 %v828, 1.442695
        %v830 = vpow.pop %v829
        %v831 = vsel %vm621, %v830, 0.0
        %832 = vadd.xlane.f32.xlu0 %v831
        %v833 = vpop.xlane.xlu0 %832
        %v834 = vrcp.pop %v833
        %v835 = vmul.f32 %v830, %v834
        %v836 = vsel %vm621, %v835, 0.0
        %v837 = vrot.slane %v836, 4
        %v838 = vadd.f32 %v836, %v837
        %v839 = vrot.slane %v838, 2
        %v840 = vadd.f32 %v838, %v839
        %v841 = vrot.slane %v840, 1
        %v842 = vadd.f32 %v840, %v841
        %v843 = vpack.c.bf16 %v835, %v835
        %v845 = vsel %vm621, %v843, 0
        %847 = vmatprep.subr.bf16.mxu0 0
        %848 = vmatpush1.bf16.msra.mxu0 %v649
        %849 = vmatprep.subr.bf16.mxu0 0
        %850 = vmatpush1.bf16.msra.mxu0 0
        %851 = vmatprep.subr.bf16.mxu0 0
        %852 = vmatpush1.bf16.msra.mxu0 0
        %853 = vmatprep.subr.bf16.mxu0 0
        %854 = vmatpush1.bf16.msra.mxu0 0
        %855 = vmatprep.subr.bf16.mxu0 0
        %856 = vmatpush1.bf16.msra.mxu0 0
        %857 = vmatprep.subr.bf16.mxu0 0
        %858 = vmatpush1.bf16.msra.mxu0 0
        %859 = vmatprep.subr.bf16.mxu0 0
        %860 = vmatpush1.bf16.msra.mxu0 0
        %861 = vmatprep.subr.bf16.mxu0 0
        %862 = vmatpush1.bf16.msra.mxu0 0
        %863 = vmatprep.subr.bf16.mxu0 0
        %864 = vmatpush1.bf16.msra.mxu0 0
        %865 = vmatprep.subr.bf16.mxu0 0
        %866 = vmatpush1.bf16.msra.mxu0 0
        %867 = vmatprep.subr.bf16.mxu0 0
        %868 = vmatpush1.bf16.msra.mxu0 0
        %869 = vmatprep.subr.bf16.mxu0 0
        %870 = vmatpush1.bf16.msra.mxu0 0
        %871 = vmatprep.subr.bf16.mxu0 0
        %872 = vmatpush1.bf16.msra.mxu0 0
        %873 = vmatprep.subr.bf16.mxu0 0
        %874 = vmatpush1.bf16.msra.mxu0 0
        %875 = vmatprep.subr.bf16.mxu0 0
        %876 = vmatpush1.bf16.msra.mxu0 0
        %877 = vmatprep.subr.bf16.mxu0 0
        %878 = vmatpush1.bf16.msra.mxu0 0
        %879 = vmatprep.mubr.bf16.mxu0 0
        %880 = vmatmul.mubr.bf16.gmra.mrb[0].mxu0 %v845
        %v881 = vpop.f32.mrb[0].mxu0
        %v882 = vadd.f32 0.0, %v881
        %v883 = vpop.f32.mrb[0].mxu0
        %v884 = vpop.f32.mrb[0].mxu0
        %v885 = vpop.f32.mrb[0].mxu0
        %886 = vdwg.mxu0
        %v887 = vmul.f32 %v410, %v693
        %888 = vrot.lane.b32.xlu0 %v410, 96
        %v889 = vpop.permute.xlu0 %888
        %v890 = vsel %vm418, %v889, 0
        %892 = vmatprep.subr.mxu0 0.0
        %893 = vmatpush1.msra.mxu0 %v337
        %894 = vmatprep.subr.mxu0 0.0
        %895 = vmatpush1.msra.mxu0 %v338
        %896 = vmatprep.subr.mxu0 0.0
        %897 = vmatpush1.msra.mxu0 %v339
        %898 = vmatprep.subr.mxu0 0.0
        %899 = vmatpush1.msra.mxu0 %v340
        %900 = vmatprep.subr.mxu0 0.0
        %901 = vmatpush1.msra.mxu0 0.0
        %902 = vmatprep.subr.mxu0 0.0
        %903 = vmatpush1.msra.mxu0 0.0
        %904 = vmatprep.subr.mxu0 0.0
        %905 = vmatpush1.msra.mxu0 0.0
        %906 = vmatprep.subr.mxu0 0.0
        %907 = vmatpush1.msra.mxu0 0.0
        %908 = vmatprep.subr.mxu0 0.0
        %909 = vmatpush1.msra.mxu0 0.0
        %910 = vmatprep.subr.mxu0 0.0
        %911 = vmatpush1.msra.mxu0 0.0
        %912 = vmatprep.subr.mxu0 0.0
        %913 = vmatpush1.msra.mxu0 0.0
        %914 = vmatprep.subr.mxu0 0.0
        %915 = vmatpush1.msra.mxu0 0.0
        %916 = vmatprep.subr.mxu0 0.0
        %917 = vmatpush1.msra.mxu0 0.0
        %918 = vmatprep.subr.mxu0 0.0
        %919 = vmatpush1.msra.mxu0 0.0
        %920 = vmatprep.subr.mxu0 0.0
        %921 = vmatpush1.msra.mxu0 0.0
        %922 = vmatprep.subr.mxu0 0.0
        %923 = vmatpush1.msra.mxu0 0.0
        %924 = vmatprep.subr.mxu0 0.0
        %925 = vmatpush1.msra.mxu0 0.0
        %926 = vmatprep.subr.mxu0 0.0
        %927 = vmatpush1.msra.mxu0 0.0
        %928 = vmatprep.subr.mxu0 0.0
        %929 = vmatpush1.msra.mxu0 0.0
        %930 = vmatprep.subr.mxu0 0.0
        %931 = vmatpush1.msra.mxu0 0.0
        %932 = vmatprep.subr.mxu0 0.0
        %933 = vmatpush1.msra.mxu0 0.0
        %934 = vmatprep.subr.mxu0 0.0
        %935 = vmatpush1.msra.mxu0 0.0
        %936 = vmatprep.subr.mxu0 0.0
        %937 = vmatpush1.msra.mxu0 0.0
        %938 = vmatprep.subr.mxu0 0.0
        %939 = vmatpush1.msra.mxu0 0.0
        %940 = vmatprep.subr.mxu0 0.0
        %941 = vmatpush1.msra.mxu0 0.0
        %942 = vmatprep.subr.mxu0 0.0
        %943 = vmatpush1.msra.mxu0 0.0
        %944 = vmatprep.subr.mxu0 0.0
        %945 = vmatpush1.msra.mxu0 0.0
        %946 = vmatprep.subr.mxu0 0.0
        %947 = vmatpush1.msra.mxu0 0.0
        %948 = vmatprep.subr.mxu0 0.0
        %949 = vmatpush1.msra.mxu0 0.0
        %950 = vmatprep.subr.mxu0 0.0
        %951 = vmatpush1.msra.mxu0 0.0
        %952 = vmatprep.subr.mxu0 0.0
        %953 = vmatpush1.msra.mxu0 0.0
        %954 = vmatprep.subr.mxu0 0.0
        %955 = vmatpush1.msra.mxu0 0.0
        %956 = vmatprep.mubr.f32.mxu0 0.0
        %957 = vmatmul.mubr.f32.gmra.mrb[0].mxu0 %v890
        %v958 = vpop.f32.mrb[0].mxu0
        %v959 = vadd.f32 0.0, %v958
        %v960 = vpop.f32.mrb[0].mxu0
        %961 = vdwg.mxu0
        %v962 = vmul.f32 %v959, %v336
        %964 = vrot.lane.b32.xlu0 %v962, 32
        %v965 = vpop.permute.xlu0 %964
        %v967 = vadd.f32 %v887, %v965
        %v968 = vpack.c.bf16 %v967, %v967
        %969 = vrot.lane.b32.xlu0 %v335, 64
        %v970 = vpop.permute.xlu0 %969
        %v972 = vmul.f32 %v408, %v970
        %973 = vrot.lane.b32.xlu0 %v408, 64
        %v974 = vpop.permute.xlu0 %973
        %v975 = vsel %vm418, %v974, 0
        %977 = vmatprep.subr.mxu0 0.0
        %978 = vmatpush1.msra.mxu0 %v337
        %979 = vmatprep.subr.mxu0 0.0
        %980 = vmatpush1.msra.mxu0 %v338
        %981 = vmatprep.subr.mxu0 0.0
        %982 = vmatpush1.msra.mxu0 %v339
        %983 = vmatprep.subr.mxu0 0.0
        %984 = vmatpush1.msra.mxu0 %v340
        %985 = vmatprep.subr.mxu0 0.0
        %986 = vmatpush1.msra.mxu0 0.0
        %987 = vmatprep.subr.mxu0 0.0
        %988 = vmatpush1.msra.mxu0 0.0
        %989 = vmatprep.subr.mxu0 0.0
        %990 = vmatpush1.msra.mxu0 0.0
        %991 = vmatprep.subr.mxu0 0.0
        %992 = vmatpush1.msra.mxu0 0.0
        %993 = vmatprep.subr.mxu0 0.0
        %994 = vmatpush1.msra.mxu0 0.0
        %995 = vmatprep.subr.mxu0 0.0
        %996 = vmatpush1.msra.mxu0 0.0
        %997 = vmatprep.subr.mxu0 0.0
        %998 = vmatpush1.msra.mxu0 0.0
        %999 = vmatprep.subr.mxu0 0.0
        %1000 = vmatpush1.msra.mxu0 0.0
        %1001 = vmatprep.subr.mxu0 0.0
        %1002 = vmatpush1.msra.mxu0 0.0
        %1003 = vmatprep.subr.mxu0 0.0
        %1004 = vmatpush1.msra.mxu0 0.0
        %1005 = vmatprep.subr.mxu0 0.0
        %1006 = vmatpush1.msra.mxu0 0.0
        %1007 = vmatprep.subr.mxu0 0.0
        %1008 = vmatpush1.msra.mxu0 0.0
        %1009 = vmatprep.subr.mxu0 0.0
        %1010 = vmatpush1.msra.mxu0 0.0
        %1011 = vmatprep.subr.mxu0 0.0
        %1012 = vmatpush1.msra.mxu0 0.0
        %1013 = vmatprep.subr.mxu0 0.0
        %1014 = vmatpush1.msra.mxu0 0.0
        %1015 = vmatprep.subr.mxu0 0.0
        %1016 = vmatpush1.msra.mxu0 0.0
        %1017 = vmatprep.subr.mxu0 0.0
        %1018 = vmatpush1.msra.mxu0 0.0
        %1019 = vmatprep.subr.mxu0 0.0
        %1020 = vmatpush1.msra.mxu0 0.0
        %1021 = vmatprep.subr.mxu0 0.0
        %1022 = vmatpush1.msra.mxu0 0.0
        %1023 = vmatprep.subr.mxu0 0.0
        %1024 = vmatpush1.msra.mxu0 0.0
        %1025 = vmatprep.subr.mxu0 0.0
        %1026 = vmatpush1.msra.mxu0 0.0
        %1027 = vmatprep.subr.mxu0 0.0
        %1028 = vmatpush1.msra.mxu0 0.0
        %1029 = vmatprep.subr.mxu0 0.0
        %1030 = vmatpush1.msra.mxu0 0.0
        %1031 = vmatprep.subr.mxu0 0.0
        %1032 = vmatpush1.msra.mxu0 0.0
        %1033 = vmatprep.subr.mxu0 0.0
        %1034 = vmatpush1.msra.mxu0 0.0
        %1035 = vmatprep.subr.mxu0 0.0
        %1036 = vmatpush1.msra.mxu0 0.0
        %1037 = vmatprep.subr.mxu0 0.0
        %1038 = vmatpush1.msra.mxu0 0.0
        %1039 = vmatprep.subr.mxu0 0.0
        %1040 = vmatpush1.msra.mxu0 0.0
        %1041 = vmatprep.mubr.f32.mxu0 0.0
        %1042 = vmatmul.mubr.f32.gmra.mrb[0].mxu0 %v975
        %v1043 = vpop.f32.mrb[0].mxu0
        %v1044 = vadd.f32 0.0, %v1043
        %v1045 = vpop.f32.mrb[0].mxu0
        %1046 = vdwg.mxu0
        %v1047 = vmul.f32 %v1044, %v336
        %1049 = vrot.lane.b32.xlu0 %v1047, 64
        %v1050 = vpop.permute.xlu0 %1049
        %v1052 = vadd.f32 %v972, %v1050
        %v1053 = vpack.c.bf16 %v1052, %v1052
        %1055 = vrot.lane.b32.xlu0 %v1053, 64
        %v1056 = vpop.permute.xlu0 %1055
        %1058 = vrot.lane.b32.xlu0 %v968, 96
        %v1059 = vpop.permute.xlu0 %1058
        %v1061 = vsel %vm418, %v1056, 0
        %v1064 = vsel %vm418, %v1059, 0
        %1066 = vmatprep.subr.bf16.mxu0 0
        %1067 = vmatpush1.bf16.xpose.msra.mxu0 %v1064
        %1068 = vmatprep.subr.bf16.mxu0 0
        %1069 = vmatpush1.bf16.xpose.msra.mxu0 0
        %1070 = vmatprep.subr.bf16.mxu0 0
        %1071 = vmatpush1.bf16.xpose.msra.mxu0 0
        %1072 = vmatprep.subr.bf16.mxu0 0
        %1073 = vmatpush1.bf16.xpose.msra.mxu0 0
        %1074 = vmatprep.subr.bf16.mxu0 0
        %1075 = vmatpush1.bf16.xpose.msra.mxu0 0
        %1076 = vmatprep.subr.bf16.mxu0 0
        %1077 = vmatpush1.bf16.xpose.msra.mxu0 0
        %1078 = vmatprep.subr.bf16.mxu0 0
        %1079 = vmatpush1.bf16.xpose.msra.mxu0 0
        %1080 = vmatprep.subr.bf16.mxu0 0
        %1081 = vmatpush1.bf16.xpose.msra.mxu0 0
        %1082 = vmatprep.subr.bf16.mxu0 0
        %1083 = vmatpush1.bf16.xpose.msra.mxu0 0
        %1084 = vmatprep.subr.bf16.mxu0 0
        %1085 = vmatpush1.bf16.xpose.msra.mxu0 0
        %1086 = vmatprep.subr.bf16.mxu0 0
        %1087 = vmatpush1.bf16.xpose.msra.mxu0 0
        %1088 = vmatprep.subr.bf16.mxu0 0
        %1089 = vmatpush1.bf16.xpose.msra.mxu0 0
        %1090 = vmatprep.subr.bf16.mxu0 0
        %1091 = vmatpush1.bf16.xpose.msra.mxu0 0
        %1092 = vmatprep.subr.bf16.mxu0 0
        %1093 = vmatpush1.bf16.xpose.msra.mxu0 0
        %1094 = vmatprep.subr.bf16.mxu0 0
        %1095 = vmatpush1.bf16.xpose.msra.mxu0 0
        %1096 = vmatprep.subr.bf16.mxu0 0
        %1097 = vmatpush1.bf16.xpose.msra.mxu0 0
        %1098 = vmatprep.mubr.bf16.mxu0 0
        %1099 = vmatmul.mubr.bf16.gmra.mrb[0].mxu0 %v1061
        %v1100 = vpop.f32.mrb[0].mxu0
        %v1101 = vadd.f32 0.0, %v1100
        %v1102 = vpop.f32.mrb[0].mxu0
        %v1103 = vpop.f32.mrb[0].mxu0
        %v1104 = vpop.f32.mrb[0].mxu0
        %1105 = vdwg.mxu0
        %v1106 = vmul.f32 %v1101, 0.17677669
        %v1107 = vsel %vm416, %v1106, -3.4028235e+38
        %v1108 = vsel %vm621, %v1107, -inf
        %1109 = vmax.xlane.f32.xlu0 %v1108
        %v1110 = vpop.xlane.xlu0 %1109
        %v1111 = vsub.f32 %v1107, %v1110
        %v1112 = vmul.f32 %v1111, 1.442695
        %v1113 = vpow.pop %v1112
        %v1114 = vsel %vm621, %v1113, 0.0
        %1115 = vadd.xlane.f32.xlu0 %v1114
        %v1116 = vpop.xlane.xlu0 %1115
        %v1117 = vrcp.pop %v1116
        %v1118 = vmul.f32 %v1113, %v1117
        %v1119 = vsel %vm621, %v1118, 0.0
        %v1120 = vrot.slane %v1119, 4
        %v1121 = vadd.f32 %v1119, %v1120
        %v1122 = vrot.slane %v1121, 2
        %v1123 = vadd.f32 %v1121, %v1122
        %v1124 = vrot.slane %v1123, 1
        %v1125 = vadd.f32 %v1123, %v1124
        %v1126 = vpack.c.bf16 %v1118, %v1118
        %1127 = vrot.lane.b32.xlu0 %v495, 32
        %v1128 = vpop.permute.xlu0 %1127
        %v1130 = vsel %vm621, %v1126, 0
        %v1133 = vsel %vm647, %v1128, 0
        %1135 = vmatprep.subr.bf16.mxu0 0
        %1136 = vmatpush1.bf16.msra.mxu0 %v1133
        %1137 = vmatprep.subr.bf16.mxu0 0
        %1138 = vmatpush1.bf16.msra.mxu0 0
        %1139 = vmatprep.subr.bf16.mxu0 0
        %1140 = vmatpush1.bf16.msra.mxu0 0
        %1141 = vmatprep.subr.bf16.mxu0 0
        %1142 = vmatpush1.bf16.msra.mxu0 0
        %1143 = vmatprep.subr.bf16.mxu0 0
        %1144 = vmatpush1.bf16.msra.mxu0 0
        %1145 = vmatprep.subr.bf16.mxu0 0
        %1146 = vmatpush1.bf16.msra.mxu0 0
        %1147 = vmatprep.subr.bf16.mxu0 0
        %1148 = vmatpush1.bf16.msra.mxu0 0
        %1149 = vmatprep.subr.bf16.mxu0 0
        %1150 = vmatpush1.bf16.msra.mxu0 0
        %1151 = vmatprep.subr.bf16.mxu0 0
        %1152 = vmatpush1.bf16.msra.mxu0 0
        %1153 = vmatprep.subr.bf16.mxu0 0
        %1154 = vmatpush1.bf16.msra.mxu0 0
        %1155 = vmatprep.subr.bf16.mxu0 0
        %1156 = vmatpush1.bf16.msra.mxu0 0
        %1157 = vmatprep.subr.bf16.mxu0 0
        %1158 = vmatpush1.bf16.msra.mxu0 0
        %1159 = vmatprep.subr.bf16.mxu0 0
        %1160 = vmatpush1.bf16.msra.mxu0 0
        %1161 = vmatprep.subr.bf16.mxu0 0
        %1162 = vmatpush1.bf16.msra.mxu0 0
        %1163 = vmatprep.subr.bf16.mxu0 0
        %1164 = vmatpush1.bf16.msra.mxu0 0
        %1165 = vmatprep.subr.bf16.mxu0 0
        %1166 = vmatpush1.bf16.msra.mxu0 0
        %1167 = vmatprep.mubr.bf16.mxu0 0
        %1168 = vmatmul.mubr.bf16.gmra.mrb[0].mxu0 %v1130
        %v1169 = vpop.f32.mrb[0].mxu0
        %v1170 = vadd.f32 0.0, %v1169
        %v1171 = vpop.f32.mrb[0].mxu0
        %v1172 = vpop.f32.mrb[0].mxu0
        %v1173 = vpop.f32.mrb[0].mxu0
        %1174 = vdwg.mxu0
        %1175 = vrot.lane.b32.xlu0 %v335, 96
        %v1176 = vpop.permute.xlu0 %1175
        %v1178 = vmul.f32 %v408, %v1176
        %1179 = vrot.lane.b32.xlu0 %v408, 32
        %v1180 = vpop.permute.xlu0 %1179
        %v1181 = vsel %vm418, %v1180, 0
        %1183 = vmatprep.subr.mxu0 0.0
        %1184 = vmatpush1.msra.mxu0 %v337
        %1185 = vmatprep.subr.mxu0 0.0
        %1186 = vmatpush1.msra.mxu0 %v338
        %1187 = vmatprep.subr.mxu0 0.0
        %1188 = vmatpush1.msra.mxu0 %v339
        %1189 = vmatprep.subr.mxu0 0.0
        %1190 = vmatpush1.msra.mxu0 %v340
        %1191 = vmatprep.subr.mxu0 0.0
        %1192 = vmatpush1.msra.mxu0 0.0
        %1193 = vmatprep.subr.mxu0 0.0
        %1194 = vmatpush1.msra.mxu0 0.0
        %1195 = vmatprep.subr.mxu0 0.0
        %1196 = vmatpush1.msra.mxu0 0.0
        %1197 = vmatprep.subr.mxu0 0.0
        %1198 = vmatpush1.msra.mxu0 0.0
        %1199 = vmatprep.subr.mxu0 0.0
        %1200 = vmatpush1.msra.mxu0 0.0
        %1201 = vmatprep.subr.mxu0 0.0
        %1202 = vmatpush1.msra.mxu0 0.0
        %1203 = vmatprep.subr.mxu0 0.0
        %1204 = vmatpush1.msra.mxu0 0.0
        %1205 = vmatprep.subr.mxu0 0.0
        %1206 = vmatpush1.msra.mxu0 0.0
        %1207 = vmatprep.subr.mxu0 0.0
        %1208 = vmatpush1.msra.mxu0 0.0
        %1209 = vmatprep.subr.mxu0 0.0
        %1210 = vmatpush1.msra.mxu0 0.0
        %1211 = vmatprep.subr.mxu0 0.0
        %1212 = vmatpush1.msra.mxu0 0.0
        %1213 = vmatprep.subr.mxu0 0.0
        %1214 = vmatpush1.msra.mxu0 0.0
        %1215 = vmatprep.subr.mxu0 0.0
        %1216 = vmatpush1.msra.mxu0 0.0
        %1217 = vmatprep.subr.mxu0 0.0
        %1218 = vmatpush1.msra.mxu0 0.0
        %1219 = vmatprep.subr.mxu0 0.0
        %1220 = vmatpush1.msra.mxu0 0.0
        %1221 = vmatprep.subr.mxu0 0.0
        %1222 = vmatpush1.msra.mxu0 0.0
        %1223 = vmatprep.subr.mxu0 0.0
        %1224 = vmatpush1.msra.mxu0 0.0
        %1225 = vmatprep.subr.mxu0 0.0
        %1226 = vmatpush1.msra.mxu0 0.0
        %1227 = vmatprep.subr.mxu0 0.0
        %1228 = vmatpush1.msra.mxu0 0.0
        %1229 = vmatprep.subr.mxu0 0.0
        %1230 = vmatpush1.msra.mxu0 0.0
        %1231 = vmatprep.subr.mxu0 0.0
        %1232 = vmatpush1.msra.mxu0 0.0
        %1233 = vmatprep.subr.mxu0 0.0
        %1234 = vmatpush1.msra.mxu0 0.0
        %1235 = vmatprep.subr.mxu0 0.0
        %1236 = vmatpush1.msra.mxu0 0.0
        %1237 = vmatprep.subr.mxu0 0.0
        %1238 = vmatpush1.msra.mxu0 0.0
        %1239 = vmatprep.subr.mxu0 0.0
        %1240 = vmatpush1.msra.mxu0 0.0
        %1241 = vmatprep.subr.mxu0 0.0
        %1242 = vmatpush1.msra.mxu0 0.0
        %1243 = vmatprep.subr.mxu0 0.0
        %1244 = vmatpush1.msra.mxu0 0.0
        %1245 = vmatprep.subr.mxu0 0.0
        %1246 = vmatpush1.msra.mxu0 0.0
        %1247 = vmatprep.mubr.f32.mxu0 0.0
        %1248 = vmatmul.mubr.f32.gmra.mrb[0].mxu0 %v1181
        %v1249 = vpop.f32.mrb[0].mxu0
        %v1250 = vadd.f32 0.0, %v1249
        %v1251 = vpop.f32.mrb[0].mxu0
        %1252 = vdwg.mxu0
        %v1253 = vmul.f32 %v1250, %v336
        %1255 = vrot.lane.b32.xlu0 %v1253, 96
        %v1256 = vpop.permute.xlu0 %1255
        %v1258 = vadd.f32 %v1178, %v1256
        %v1259 = vpack.c.bf16 %v1258, %v1258
        %1261 = vrot.lane.b32.xlu0 %v1259, 32
        %v1262 = vpop.permute.xlu0 %1261
        %v1264 = vsel %vm418, %v1262, 0
        %1266 = vmatprep.subr.bf16.mxu0 0
        %1267 = vmatpush1.bf16.xpose.msra.mxu0 %v1064
        %1268 = vmatprep.subr.bf16.mxu0 0
        %1269 = vmatpush1.bf16.xpose.msra.mxu0 0
        %1270 = vmatprep.subr.bf16.mxu0 0
        %1271 = vmatpush1.bf16.xpose.msra.mxu0 0
        %1272 = vmatprep.subr.bf16.mxu0 0
        %1273 = vmatpush1.bf16.xpose.msra.mxu0 0
        %1274 = vmatprep.subr.bf16.mxu0 0
        %1275 = vmatpush1.bf16.xpose.msra.mxu0 0
        %1276 = vmatprep.subr.bf16.mxu0 0
        %1277 = vmatpush1.bf16.xpose.msra.mxu0 0
        %1278 = vmatprep.subr.bf16.mxu0 0
        %1279 = vmatpush1.bf16.xpose.msra.mxu0 0
        %1280 = vmatprep.subr.bf16.mxu0 0
        %1281 = vmatpush1.bf16.xpose.msra.mxu0 0
        %1282 = vmatprep.subr.bf16.mxu0 0
        %1283 = vmatpush1.bf16.xpose.msra.mxu0 0
        %1284 = vmatprep.subr.bf16.mxu0 0
        %1285 = vmatpush1.bf16.xpose.msra.mxu0 0
        %1286 = vmatprep.subr.bf16.mxu0 0
        %1287 = vmatpush1.bf16.xpose.msra.mxu0 0
        %1288 = vmatprep.subr.bf16.mxu0 0
        %1289 = vmatpush1.bf16.xpose.msra.mxu0 0
        %1290 = vmatprep.subr.bf16.mxu0 0
        %1291 = vmatpush1.bf16.xpose.msra.mxu0 0
        %1292 = vmatprep.subr.bf16.mxu0 0
        %1293 = vmatpush1.bf16.xpose.msra.mxu0 0
        %1294 = vmatprep.subr.bf16.mxu0 0
        %1295 = vmatpush1.bf16.xpose.msra.mxu0 0
        %1296 = vmatprep.subr.bf16.mxu0 0
        %1297 = vmatpush1.bf16.xpose.msra.mxu0 0
        %1298 = vmatprep.mubr.bf16.mxu0 0
        %1299 = vmatmul.mubr.bf16.gmra.mrb[0].mxu0 %v1264
        %v1300 = vpop.f32.mrb[0].mxu0
        %v1301 = vadd.f32 0.0, %v1300
        %v1302 = vpop.f32.mrb[0].mxu0
        %v1303 = vpop.f32.mrb[0].mxu0
        %v1304 = vpop.f32.mrb[0].mxu0
        %1305 = vdwg.mxu0
        %v1306 = vmul.f32 %v1301, 0.17677669
        %v1307 = vsel %vm416, %v1306, -3.4028235e+38
        %v1308 = vsel %vm621, %v1307, -inf
        %1309 = vmax.xlane.f32.xlu0 %v1308
        %v1310 = vpop.xlane.xlu0 %1309
        %v1311 = vsub.f32 %v1307, %v1310
        %v1312 = vmul.f32 %v1311, 1.442695
        %v1313 = vpow.pop %v1312
        %v1314 = vsel %vm621, %v1313, 0.0
        %1315 = vadd.xlane.f32.xlu0 %v1314
        %v1316 = vpop.xlane.xlu0 %1315
        %v1317 = vrcp.pop %v1316
        %v1318 = vmul.f32 %v1313, %v1317
        %v1319 = vsel %vm621, %v1318, 0.0
        %v1320 = vrot.slane %v1319, 4
        %v1321 = vadd.f32 %v1319, %v1320
        %v1322 = vrot.slane %v1321, 2
        %v1323 = vadd.f32 %v1321, %v1322
        %v1324 = vrot.slane %v1323, 1
        %v1325 = vadd.f32 %v1323, %v1324
        %v1326 = vpack.c.bf16 %v1318, %v1318
        %v1328 = vsel %vm621, %v1326, 0
        %1330 = vmatprep.subr.bf16.mxu0 0
        %1331 = vmatpush1.bf16.msra.mxu0 %v1133
        %1332 = vmatprep.subr.bf16.mxu0 0
        %1333 = vmatpush1.bf16.msra.mxu0 0
        %1334 = vmatprep.subr.bf16.mxu0 0
        %1335 = vmatpush1.bf16.msra.mxu0 0
        %1336 = vmatprep.subr.bf16.mxu0 0
        %1337 = vmatpush1.bf16.msra.mxu0 0
        %1338 = vmatprep.subr.bf16.mxu0 0
        %1339 = vmatpush1.bf16.msra.mxu0 0
        %1340 = vmatprep.subr.bf16.mxu0 0
        %1341 = vmatpush1.bf16.msra.mxu0 0
        %1342 = vmatprep.subr.bf16.mxu0 0
        %1343 = vmatpush1.bf16.msra.mxu0 0
        %1344 = vmatprep.subr.bf16.mxu0 0
        %1345 = vmatpush1.bf16.msra.mxu0 0
        %1346 = vmatprep.subr.bf16.mxu0 0
        %1347 = vmatpush1.bf16.msra.mxu0 0
        %1348 = vmatprep.subr.bf16.mxu0 0
        %1349 = vmatpush1.bf16.msra.mxu0 0
        %1350 = vmatprep.subr.bf16.mxu0 0
        %1351 = vmatpush1.bf16.msra.mxu0 0
        %1352 = vmatprep.subr.bf16.mxu0 0
        %1353 = vmatpush1.bf16.msra.mxu0 0
        %1354 = vmatprep.subr.bf16.mxu0 0
        %1355 = vmatpush1.bf16.msra.mxu0 0
        %1356 = vmatprep.subr.bf16.mxu0 0
        %1357 = vmatpush1.bf16.msra.mxu0 0
        %1358 = vmatprep.subr.bf16.mxu0 0
        %1359 = vmatpush1.bf16.msra.mxu0 0
        %1360 = vmatprep.subr.bf16.mxu0 0
        %1361 = vmatpush1.bf16.msra.mxu0 0
        %1362 = vmatprep.mubr.bf16.mxu0 0
        %1363 = vmatmul.mubr.bf16.gmra.mrb[0].mxu0 %v1328
        %v1364 = vpop.f32.mrb[0].mxu0
        %v1365 = vadd.f32 0.0, %v1364
        %v1366 = vpop.f32.mrb[0].mxu0
        %v1367 = vpop.f32.mrb[0].mxu0
        %v1368 = vpop.f32.mrb[0].mxu0
        %1369 = vdwg.mxu0
        %1371 = vrot.lane.b32.xlu0 %v882, 32
        %v1372 = vpop.permute.xlu0 %1371
        %1375 = vrot.lane.b32.xlu0 %v1170, 64
        %v1376 = vpop.permute.xlu0 %1375
        %1379 = vrot.lane.b32.xlu0 %v1365, 96
        %v1380 = vpop.permute.xlu0 %1379
        %v1382 = vsel %vm418, %v686, %v1372
        %vm1383 = vcmask 523264
        %v1384 = vsel %vm1383, %v1382, %v1376
        %vm1385 = vcmask 785408
        %v1386 = vsel %vm1385, %v1384, %v1380
        %1387 = vmatprep.subr.mxu0 0.0
        %1388 = vmatpush1.msra.mxu0 %v319
        %1389 = vmatprep.subr.mxu0 0.0
        %1390 = vmatpush1.msra.mxu0 %v320
        %1391 = vmatprep.subr.mxu0 0.0
        %1392 = vmatpush1.msra.mxu0 %v321
        %1393 = vmatprep.subr.mxu0 0.0
        %1394 = vmatpush1.msra.mxu0 %v322
        %1395 = vmatprep.subr.mxu0 0.0
        %1396 = vmatpush1.msra.mxu0 %v323
        %1397 = vmatprep.subr.mxu0 0.0
        %1398 = vmatpush1.msra.mxu0 %v324
        %1399 = vmatprep.subr.mxu0 0.0
        %1400 = vmatpush1.msra.mxu0 %v325
        %1401 = vmatprep.subr.mxu0 0.0
        %1402 = vmatpush1.msra.mxu0 %v326
        %1403 = vmatprep.subr.mxu0 0.0
        %1404 = vmatpush1.msra.mxu0 %v327
        %1405 = vmatprep.subr.mxu0 0.0
        %1406 = vmatpush1.msra.mxu0 %v328
        %1407 = vmatprep.subr.mxu0 0.0
        %1408 = vmatpush1.msra.mxu0 %v329
        %1409 = vmatprep.subr.mxu0 0.0
        %1410 = vmatpush1.msra.mxu0 %v330
        %1411 = vmatprep.subr.mxu0 0.0
        %1412 = vmatpush1.msra.mxu0 %v331
        %1413 = vmatprep.subr.mxu0 0.0
        %1414 = vmatpush1.msra.mxu0 %v332
        %1415 = vmatprep.subr.mxu0 0.0
        %1416 = vmatpush1.msra.mxu0 %v333
        %1417 = vmatprep.subr.mxu0 0.0
        %1418 = vmatpush1.msra.mxu0 %v334
        %1419 = vmatprep.subr.mxu0 0.0
        %1420 = vmatpush1.msra.mxu0 0.0
        %1421 = vmatprep.subr.mxu0 0.0
        %1422 = vmatpush1.msra.mxu0 0.0
        %1423 = vmatprep.subr.mxu0 0.0
        %1424 = vmatpush1.msra.mxu0 0.0
        %1425 = vmatprep.subr.mxu0 0.0
        %1426 = vmatpush1.msra.mxu0 0.0
        %1427 = vmatprep.subr.mxu0 0.0
        %1428 = vmatpush1.msra.mxu0 0.0
        %1429 = vmatprep.subr.mxu0 0.0
        %1430 = vmatpush1.msra.mxu0 0.0
        %1431 = vmatprep.subr.mxu0 0.0
        %1432 = vmatpush1.msra.mxu0 0.0
        %1433 = vmatprep.subr.mxu0 0.0
        %1434 = vmatpush1.msra.mxu0 0.0
        %1435 = vmatprep.subr.mxu0 0.0
        %1436 = vmatpush1.msra.mxu0 0.0
        %1437 = vmatprep.subr.mxu0 0.0
        %1438 = vmatpush1.msra.mxu0 0.0
        %1439 = vmatprep.subr.mxu0 0.0
        %1440 = vmatpush1.msra.mxu0 0.0
        %1441 = vmatprep.subr.mxu0 0.0
        %1442 = vmatpush1.msra.mxu0 0.0
        %1443 = vmatprep.subr.mxu0 0.0
        %1444 = vmatpush1.msra.mxu0 0.0
        %1445 = vmatprep.subr.mxu0 0.0
        %1446 = vmatpush1.msra.mxu0 0.0
        %1447 = vmatprep.subr.mxu0 0.0
        %1448 = vmatpush1.msra.mxu0 0.0
        %1449 = vmatprep.subr.mxu0 0.0
        %1450 = vmatpush1.msra.mxu0 0.0
        %1451 = vmatprep.mubr.f32.mxu0 0.0
        %1452 = vmatmul.mubr.f32.gmra.mrb[0].mxu0 %v1386
        %v1453 = vpop.f32.mrb[0].mxu0
        %v1454 = vadd.f32 0.0, %v1453
        %v1455 = vpop.f32.mrb[0].mxu0
        %1456 = vdwg.mxu0
        %1457 = vst [vmem:[%s270] sm:$0xff] %v1454
        %vm1458 = vcmask 1040384
        %v1459 = vsel %vm1458, %v639, %v842
        %vm1460 = vcmask 1041408
        %v1461 = vsel %vm1460, %v1459, %v1125
        %vm1462 = vcmask 1042432
        %v1463 = vsel %vm1462, %v1461, %v1325
        %vm1464 = vcmask 60416
        %1465 = vst.msk [vmem:[%s284] sm:$0xf] %vm1464, %v1463
        %s1466 = sand.u32 %s161, 1
        %s1467 = scalar_lea.sflag [#allocation3], %s1466
        %s1468 = sand.u32 %s161, 1
        %s1469 = smul.addr %s1468, 8
        %s1470 = scalar_lea.vmem [#allocation2], %s1469
        %p1471 = scmp.lt.s32.totalorder %s22, 1
        %s1472 = scalar_select %p1471, %s22, 1
        %s1473 = smul.addr %s1472, 4
        %s1474 = scalar_lea.vmem %s7, %s1473
        // Predicated region
        $region45: #{qh2o_attention_forward.1} parent=43 // pred_check
          %p1475 = pneg %p171
        $region46: #{qh2o_attention_forward.1} parent=43 // pred_check_branch
          %1477 = sbr.rel (%p1475) target = $region48
        $region47: #{qh2o_attention_forward.1} parent=43 // pred_region
          %s1479 = ssub.s32 128, 128
          %1480 = vsyncadd %s1467, %s1479
          %s1481 = smul.addr %s22, 128
          %s1482 = scalar_lea.hbm %s6, %s1481
          %s1484 = sshll.u32 %s1470, 4
          %s1485 = int_to_ptr.vmem [resolvable:$true] %s1484
          %1487 = dma.vmem_to_hbm [thread:$0]  %s1485, 128, %s1482, %s1467
        $region48: #{qh2o_attention_forward.1} parent=43 // pred_fallthru
          _
        // Predicated region
        $region49: #{qh2o_attention_forward.1} parent=43 // pred_check
          %p1488 = pneg %p197
        $region50: #{qh2o_attention_forward.1} parent=43 // pred_check_branch
          %1490 = sbr.rel (%p1488) target = $region52
        $region51: #{qh2o_attention_forward.1} parent=43 // pred_region
          _
        $region52: #{qh2o_attention_forward.1} parent=43 // pred_fallthru
          _
      $region44: #{qh2o_attention_forward.1} parent=5 // pred_fallthru
        _
      %p1491 = scmp.le.s32.totalorder 2, %s17
      // Predicated region
      $region53: #{qh2o_attention_forward.1} parent=5 // pred_check
        %p1492 = pneg %p1491
      $region54: #{qh2o_attention_forward.1} parent=5 // pred_check_branch
        %1494 = sbr.rel (%p1492) target = $region56
      $region55: #{qh2o_attention_forward.1} parent=5 // pred_region
        %s1495 = ssub.s32 %s17, 2
        // Predicated region
        $region57: #{qh2o_attention_forward.1} parent=55 // pred_check
          %p1496 = pneg %p177
        $region58: #{qh2o_attention_forward.1} parent=55 // pred_check_branch
          %1498 = sbr.rel (%p1496) target = $region60
        $region59: #{qh2o_attention_forward.1} parent=55 // pred_region
          %s1499 = sand.u32 %s162, 1
          %s1500 = scalar_lea.sflag [#allocation3], %s1499
          %s1501 = sand.u32 %s162, 1
          %s1502 = smul.addr %s1501, 8
          %s1503 = scalar_lea.vmem [#allocation2], %s1502
          %1504 = dma.done %s1500, 128
        $region60: #{qh2o_attention_forward.1} parent=55 // pred_fallthru
          _
        // Predicated region
        $region61: #{qh2o_attention_forward.1} parent=55 // pred_check
          %p1505 = pneg %p203
        $region62: #{qh2o_attention_forward.1} parent=55 // pred_check_branch
          %1507 = sbr.rel (%p1505) target = $region64
        $region63: #{qh2o_attention_forward.1} parent=55 // pred_region
          %p1508 = scmp.lt.s32.totalorder %s23, 1
          %s1509 = scalar_select %p1508, %s23, 1
          %s1510 = smul.addr %s1509, 4
          %s1511 = scalar_lea.vmem %s7, %s1510
        $region64: #{qh2o_attention_forward.1} parent=55 // pred_fallthru
          _
      $region56: #{qh2o_attention_forward.1} parent=5 // pred_fallthru
        _
    $region6: #{qh2o_attention_forward.1} parent=1 // loop_footer
      %s21 = sadd.s32 1, %s17
    $region7: #{qh2o_attention_forward.1} parent=1 // loop_footer_branch
      %16 = sbr.rel target = $region3
    $region8: #{qh2o_attention_forward.1} parent=1 // loop_exit
      _
    %1512 = vsyncpa [#allocation3], 1
    %s1513 = scalar_lea.sflag [#allocation3], 1
    %1514 = vsyncpa %s1513, 1

</llo_original>
